<compile_context>
chip_gen: v6e
topology: v6e:2x2x1
jax: 0.10.0
libtpu: 0.0.40
codegen_flags: <defaults>
</compile_context>

<pallas_src>
import functools

import numpy as np
import jax
import jax.numpy as jnp
from jax.experimental import pallas as pl
from jax.experimental.pallas import tpu as pltpu


VMEM_LIMIT = 32 * 1024 * 1024  # explicit scoped-VMEM budget; safe on v5e/v6e/v7x


def _pick_tile(dim, target, mult):
    """Largest multiple of `mult` <= target that divides `dim`; else the full dim."""
    if dim <= target:
        return dim
    t = (target // mult) * mult
    while t >= mult:
        if dim % t == 0:
            return t
        t -= mult
    return dim


# ----------------------------- Pallas kernels -----------------------------

def _matmul_kernel(x_ref, w_ref, b_ref, o_ref, acc_ref, *, relu):
    @pl.when(pl.program_id(2) == 0)
    def _():
        acc_ref[...] = jnp.zeros_like(acc_ref)

    acc_ref[...] += jnp.dot(x_ref[...], w_ref[...],
                            preferred_element_type=jnp.float32)

    @pl.when(pl.program_id(2) == pl.num_programs(2) - 1)
    def _():
        out = acc_ref[...] + b_ref[...]
        if relu:
            out = jnp.maximum(out, 0.0)
        o_ref[...] = out.astype(o_ref.dtype)


def linear(x, w, b, *, relu=False, out_dtype=jnp.bfloat16,
           tm_target=256, tn_target=256, tk_target=512):
    """y = x @ w + b.  x:(M,K) bf16, w:(K,N) bf16, b:(N,) f32."""
    M, K = x.shape
    N = w.shape[1]
    tm = _pick_tile(M, tm_target, 8)
    tn = _pick_tile(N, tn_target, 128)
    tk = _pick_tile(K, tk_target, 128)
    return pl.pallas_call(
        functools.partial(_matmul_kernel, relu=relu),
        out_shape=jax.ShapeDtypeStruct((M, N), out_dtype),
        grid=(M // tm, N // tn, K // tk),
        in_specs=[
            pl.BlockSpec((tm, tk), lambda i, j, k: (i, k)),
            pl.BlockSpec((tk, tn), lambda i, j, k: (k, j)),
            pl.BlockSpec((1, tn), lambda i, j, k: (0, j)),
        ],
        out_specs=pl.BlockSpec((tm, tn), lambda i, j, k: (i, j)),
        scratch_shapes=[pltpu.VMEM((tm, tn), jnp.float32)],
        compiler_params=pltpu.CompilerParams(
            dimension_semantics=("parallel", "parallel", "arbitrary"),
            vmem_limit_bytes=VMEM_LIMIT),
    )(x, w, b.reshape(1, N))


def _matmul_tb_kernel(x_ref, w_ref, b_ref, o_ref, acc_ref):
    @pl.when(pl.program_id(2) == 0)
    def _():
        acc_ref[...] = jnp.zeros_like(acc_ref)

    # contract on the shared feature axis (x dim 1, w dim 1) => x @ w.T
    acc_ref[...] += jax.lax.dot_general(
        x_ref[...], w_ref[...], (((1,), (1,)), ((), ())),
        preferred_element_type=jnp.float32)

    @pl.when(pl.program_id(2) == pl.num_programs(2) - 1)
    def _():
        o_ref[...] = (acc_ref[...] + b_ref[...]).astype(o_ref.dtype)


def linear_tb(x, w, b, *, out_dtype=jnp.float32,
              tm_target=256, tn_target=256, tk_target=512):
    """y = x @ w.T + b with w stored (N, K) — no HBM transpose of the tied embedding."""
    M, K = x.shape
    N = w.shape[0]
    tm = _pick_tile(M, tm_target, 8)
    tn = _pick_tile(N, tn_target, 128)
    tk = _pick_tile(K, tk_target, 128)
    return pl.pallas_call(
        _matmul_tb_kernel,
        out_shape=jax.ShapeDtypeStruct((M, N), out_dtype),
        grid=(M // tm, N // tn, K // tk),
        in_specs=[
            pl.BlockSpec((tm, tk), lambda i, j, k: (i, k)),
            pl.BlockSpec((tn, tk), lambda i, j, k: (j, k)),
            pl.BlockSpec((1, tn), lambda i, j, k: (0, j)),
        ],
        out_specs=pl.BlockSpec((tm, tn), lambda i, j, k: (i, j)),
        scratch_shapes=[pltpu.VMEM((tm, tn), jnp.float32)],
        compiler_params=pltpu.CompilerParams(
            dimension_semantics=("parallel", "parallel", "arbitrary"),
            vmem_limit_bytes=VMEM_LIMIT),
    )(x, w, b.reshape(1, N))


def _matmul_res_ln_kernel(x_ref, w_ref, b_ref, res_ref, g_ref, beta_ref,
                          o_ref, acc_ref, *, eps):
    @pl.when(pl.program_id(1) == 0)
    def _():
        acc_ref[...] = jnp.zeros_like(acc_ref)

    acc_ref[...] += jnp.dot(x_ref[...], w_ref[...],
                            preferred_element_type=jnp.float32)

    @pl.when(pl.program_id(1) == pl.num_programs(1) - 1)
    def _():
        # sublayer(x) + residual, then LayerNormalization (torch-style unbiased std,
        # eps added to std) — matches the reference LayerNormalization module.
        y = acc_ref[...] + b_ref[...] + res_ref[...].astype(jnp.float32)
        d = y.shape[-1]
        mean = jnp.mean(y, axis=-1, keepdims=True)
        diff = y - mean
        var = jnp.sum(diff * diff, axis=-1, keepdims=True) * (1.0 / (d - 1))
        inv = pl.reciprocal(jnp.sqrt(var) + eps, approx=True)
        o_ref[...] = (g_ref[...] * diff * inv + beta_ref[...]).astype(o_ref.dtype)


def linear_res_ln(x, w, b, res, gain, beta, *, eps=1e-6, out_dtype=jnp.bfloat16,
                  tm_target=256, tk_target=512):
    """LayerNorm(x @ w + b + res): fused o-proj / ff2 epilogue. N (= d_model) untiled."""
    M, K = x.shape
    N = w.shape[1]
    tm = _pick_tile(M, tm_target, 8)
    tk = _pick_tile(K, tk_target, 128)
    return pl.pallas_call(
        functools.partial(_matmul_res_ln_kernel, eps=eps),
        out_shape=jax.ShapeDtypeStruct((M, N), out_dtype),
        grid=(M // tm, K // tk),
        in_specs=[
            pl.BlockSpec((tm, tk), lambda i, k: (i, k)),
            pl.BlockSpec((tk, N), lambda i, k: (k, 0)),
            pl.BlockSpec((1, N), lambda i, k: (0, 0)),
            pl.BlockSpec((tm, N), lambda i, k: (i, 0)),
            pl.BlockSpec((1, N), lambda i, k: (0, 0)),
            pl.BlockSpec((1, N), lambda i, k: (0, 0)),
        ],
        out_specs=pl.BlockSpec((tm, N), lambda i, k: (i, 0)),
        scratch_shapes=[pltpu.VMEM((tm, N), jnp.float32)],
        compiler_params=pltpu.CompilerParams(
            dimension_semantics=("parallel", "arbitrary"),
            vmem_limit_bytes=VMEM_LIMIT),
    )(x, w, b.reshape(1, N), res, gain.reshape(1, N), beta.reshape(1, N))


def _attention_kernel(q_ref, kv_ref, bias_ref, o_ref, *, heads, d_head, scale):
    # q_ref: (tq, D) bf16; kv_ref: (Lk, 2D) bf16 (K cols [0,D), V cols [D,2D));
    # bias_ref: (tq, Lk) additive bf16 mask bias; o_ref: (tq, D) bf16.
    d_model = heads * d_head
    bias = bias_ref[...].astype(jnp.float32)
    ctxs = []
    for h in range(heads):
        q = q_ref[:, pl.ds(h * d_head, d_head)] * scale          # scale q (Lq*Dh elems)
        k = kv_ref[:, pl.ds(h * d_head, d_head)]
        v = kv_ref[:, pl.ds(d_model + h * d_head, d_head)]
        s = jax.lax.dot_general(q, k, (((1,), (1,)), ((), ())),
                                preferred_element_type=jnp.float32)   # (tq, Lk)
        s = s + bias
        s = s - jnp.max(s, axis=-1, keepdims=True)
        p = jnp.exp(s)
        denom = jnp.sum(p, axis=-1, keepdims=True)
        p = p * pl.reciprocal(denom, approx=True)                 # EUP, not VPU divide
        ctx = jnp.dot(p.astype(v.dtype), v, preferred_element_type=jnp.float32)
        ctxs.append(ctx)
    # single lane-dense store of all heads
    o_ref[...] = jnp.concatenate(ctxs, axis=-1).astype(o_ref.dtype)


def attention(q, kv, bias, *, heads):
    """q: (B,Lq,D) bf16; kv: (B,Lk,2D) bf16 (packed K|V); bias: (B,Lq,Lk) bf16 additive."""
    B, Lq, D = q.shape
    Lk = kv.shape[1]
    d_head = D // heads
    scale = float(1.0 / np.sqrt(d_head))
    tq = _pick_tile(Lq, 256, 8)
    return pl.pallas_call(
        functools.partial(_attention_kernel, heads=heads, d_head=d_head, scale=scale),
        out_shape=jax.ShapeDtypeStruct((B, Lq, D), jnp.bfloat16),
        grid=(B, Lq // tq),
        in_specs=[
            pl.BlockSpec((None, tq, D), lambda b, i: (b, i, 0)),
            pl.BlockSpec((None, Lk, 2 * D), lambda b, i: (b, 0, 0)),
            pl.BlockSpec((None, tq, Lk), lambda b, i: (b, i, 0)),
        ],
        out_specs=pl.BlockSpec((None, tq, D), lambda b, i: (b, i, 0)),
        compiler_params=pltpu.CompilerParams(
            dimension_semantics=("parallel", "parallel"),
            vmem_limit_bytes=VMEM_LIMIT),
    )(q, kv, bias)


# ----------------------------- parameters -----------------------------

def init_linear_params(key, d_in, d_out):
    kw, kb = jax.random.split(key)
    lim = 1.0 / np.sqrt(d_in)
    w = jax.random.uniform(kw, (d_in, d_out), jnp.float32, -lim, lim).astype(jnp.bfloat16)
    b = jax.random.uniform(kb, (d_out,), jnp.float32, -lim, lim)   # biases stay f32
    return w, b


def init_mha_params(keys, d_model):
    wq, bq = init_linear_params(keys[0], d_model, d_model)
    wk, bk = init_linear_params(keys[1], d_model, d_model)
    wv, bv = init_linear_params(keys[2], d_model, d_model)
    wo, bo = init_linear_params(keys[3], d_model, d_model)
    return {
        "wq": wq, "bq": bq,
        "wkv": jnp.concatenate([wk, wv], axis=1),       # fused K|V projection (D, 2D)
        "bkv": jnp.concatenate([bk, bv], axis=0),
        "wo": wo, "bo": bo,
    }


def init_params(key, layers_count, d_model, d_ff, vocab_size):
    keys = jax.random.split(key, 2 + layers_count)
    params = {}
    params["embedding"] = (0.05 * jax.random.normal(
        keys[0], (vocab_size, d_model), jnp.float32)).astype(jnp.bfloat16)
    # generator weight is tied to the embedding; only its bias is independent.
    params["gen_bias"] = jax.random.uniform(
        keys[1], (vocab_size,), jnp.float32,
        -1.0 / np.sqrt(d_model), 1.0 / np.sqrt(d_model))
    layers = []
    for li in range(layers_count):
        lk = jax.random.split(keys[2 + li], 10)
        layer = {
            "self_attn": init_mha_params(lk[0:4], d_model),
            "mem_attn": init_mha_params(lk[4:8], d_model),
            "ff1": init_linear_params(lk[8], d_model, d_ff),
            "ff2": init_linear_params(lk[9], d_ff, d_model),
            "ln1": (jnp.ones((d_model,), jnp.float32), jnp.zeros((d_model,), jnp.float32)),
            "ln2": (jnp.ones((d_model,), jnp.float32), jnp.zeros((d_model,), jnp.float32)),
            "ln3": (jnp.ones((d_model,), jnp.float32), jnp.zeros((d_model,), jnp.float32)),
        }
        layers.append(layer)
    params["layers"] = layers
    return params


# ----------------------------- model forward (glue) -----------------------------

def decoder_layer(x2, memory2, B, Lt, Ls, self_bias, mem_bias, p, heads, D):
    # x2: (B*Lt, D) bf16, memory2: (B*Ls, D) bf16
    # --- self-attention sublayer (Q proj + fused KV proj, fused o-proj+res+LN) ---
    sa = p["self_attn"]
    q = linear(x2, sa["wq"], sa["bq"]).reshape(B, Lt, D)
    kv = linear(x2, sa["wkv"], sa["bkv"]).reshape(B, Lt, 2 * D)
    ctx = attention(q, kv, self_bias, heads=heads).reshape(-1, D)
    x2 = linear_res_ln(ctx, sa["wo"], sa["bo"], x2, p["ln1"][0], p["ln1"][1])
    # --- memory (cross) attention sublayer ---
    ma = p["mem_attn"]
    q = linear(x2, ma["wq"], ma["bq"]).reshape(B, Lt, D)
    kv = linear(memory2, ma["wkv"], ma["bkv"]).reshape(B, Ls, 2 * D)
    ctx = attention(q, kv, mem_bias, heads=heads).reshape(-1, D)
    x2 = linear_res_ln(ctx, ma["wo"], ma["bo"], x2, p["ln2"][0], p["ln2"][1])
    # --- pointwise feed-forward sublayer (ReLU fused into first matmul epilogue) ---
    h = linear(x2, p["ff1"][0], p["ff1"][1], relu=True)
    x2 = linear_res_ln(h, p["ff2"][0], p["ff2"][1], x2, p["ln3"][0], p["ln3"][1])
    return x2


def transformer_decoder(token_ids, memory, memory_mask, inputs_mask, params, heads):
    B, Lt = token_ids.shape
    V, D = params["embedding"].shape
    Ls = memory.shape[1]
    # embedding lookup as a gather (pure DMA) instead of a one-hot matmul
    x2 = jnp.take(params["embedding"], token_ids.reshape(-1), axis=0)      # (B*Lt, D) bf16
    memory2 = memory.reshape(-1, D).astype(jnp.bfloat16)
    # masks (nonzero => masked, torch masked_fill semantics) -> additive bf16 biases
    if inputs_mask is None:
        self_bias = jnp.zeros((B, Lt, Lt), jnp.bfloat16)
    else:
        self_bias = jnp.where(inputs_mask != 0, -1e18, 0.0).astype(jnp.bfloat16)
    mem_bias = jnp.where(memory_mask != 0, -1e18, 0.0).astype(jnp.bfloat16)
    for p in params["layers"]:
        x2 = decoder_layer(x2, memory2, B, Lt, Ls, self_bias, mem_bias, p, heads, D)
    # generator: weight tied to embedding (V, D); contract on D inside the kernel
    logits = linear_tb(x2, params["embedding"], params["gen_bias"], out_dtype=jnp.float32)
    return logits.reshape(B, Lt, V)


# ----------------------------- main -----------------------------

if __name__ == "__main__":
    layers_count = 2
    d_model = 32
    heads_count = 4
    d_ff = 64
    vocab_size = 16
    B, Lt, Ls = 2, 8, 8

    key = jax.random.PRNGKey(0)
    k_params, k_tok, k_mem = jax.random.split(key, 3)

    params = init_params(k_params, layers_count, d_model, d_ff, vocab_size)

    token_ids = jax.random.randint(k_tok, (B, Lt), 0, vocab_size, dtype=jnp.int32)
    memory = jax.random.normal(k_mem, (B, Ls, d_model), jnp.float32)

    # masks: nonzero entries are masked (torch masked_fill semantics)
    causal = jnp.triu(jnp.ones((Lt, Lt), jnp.int32), k=1)
    inputs_mask = jnp.broadcast_to(causal, (B, Lt, Lt)).astype(jnp.int32)
    memory_mask = jnp.zeros((B, Lt, Ls), jnp.int32)

    fwd = jax.jit(functools.partial(transformer_decoder, heads=heads_count))
    logits = fwd(token_ids, memory, memory_mask, inputs_mask, params)
    jax.block_until_ready(logits)

    assert logits.shape == (B, Lt, vocab_size)
    assert bool(jnp.all(jnp.isfinite(logits)))
    print("KERNEL_OK")
</pallas_src>

<mosaic_0001>
module attributes {stable_mosaic.version = 11 : i64} {
  func.func @_matmul_kernel(%arg0: i32, %arg1: i32, %arg2: i32, %arg3: memref<16x32xbf16, #tpu.memory_space<vmem>>, %arg4: memref<32x64xbf16, #tpu.memory_space<vmem>>, %arg5: memref<1x64xf32, #tpu.memory_space<vmem>>, %arg6: memref<16x64xbf16, #tpu.memory_space<vmem>>, %arg7: memref<16x64xf32, #tpu.memory_space<vmem>>) attributes {dimension_semantics = [#tpu.dimension_semantics<parallel>, #tpu.dimension_semantics<parallel>, #tpu.dimension_semantics<arbitrary>], iteration_bounds = array<i64: 1, 1, 1>, scalar_prefetch = 0 : i64, scratch_operands = 1 : i64, tpu.core_type = #tpu.core_type<tc>, window_params = [{transform_indices = @transform_0, window_bounds = array<i64: 16, 32>}, {transform_indices = @transform_1, window_bounds = array<i64: 32, 64>}, {transform_indices = @transform_2, window_bounds = array<i64: 1, 64>}, {transform_indices = @transform_3, window_bounds = array<i64: 16, 64>}]} {
    %c0_i32 = arith.constant 0 : i32
    %0 = arith.cmpi eq, %arg2, %c0_i32 : i32
    %1 = arith.extui %0 : i1 to i32
    %c0_i32_0 = arith.constant 0 : i32
    %2 = arith.cmpi ne, %1, %c0_i32_0 : i32
    scf.if %2 {
      %cst_10 = arith.constant 0.000000e+00 : f32
      %12 = vector.broadcast %cst_10 : f32 to vector<16x64xf32>
      %c0_11 = arith.constant 0 : index
      %c0_12 = arith.constant 0 : index
      %13 = vector.load %arg7[%c0_11, %c0_12] : memref<16x64xf32, #tpu.memory_space<vmem>>, vector<16x64xf32>
      tpu.vector_store %arg7[%c0_11, %c0_12], %12 {strides = array<i32>} : memref<16x64xf32, #tpu.memory_space<vmem>>, vector<16x64xf32>,
    } else {
    }
    %c0 = arith.constant 0 : index
    %c0_1 = arith.constant 0 : index
    %3 = vector.load %arg7[%c0, %c0_1] : memref<16x64xf32, #tpu.memory_space<vmem>>, vector<16x64xf32>
    %c0_2 = arith.constant 0 : index
    %c0_3 = arith.constant 0 : index
    %4 = vector.load %arg3[%c0_2, %c0_3] : memref<16x32xbf16, #tpu.memory_space<vmem>>, vector<16x32xbf16>
    %c0_4 = arith.constant 0 : index
    %c0_5 = arith.constant 0 : index
    %5 = vector.load %arg4[%c0_4, %c0_5] : memref<32x64xbf16, #tpu.memory_space<vmem>>, vector<32x64xbf16>
    %cst = arith.constant dense<0.000000e+00> : vector<16x64xf32>
    %6 = tpu.matmul %4, %5, %cst {dimension_numbers = #tpu.dot_dimension_numbers<[1], [0], [0], [1], [0, 0, 1, 1], [], []>} : vector<16x32xbf16>, vector<32x64xbf16>, vector<16x64xf32> -> vector<16x64xf32>
    %7 = arith.addf %3, %6 : vector<16x64xf32>
    %c0_6 = arith.constant 0 : index
    %c0_7 = arith.constant 0 : index
    %8 = vector.load %arg7[%c0_6, %c0_7] : memref<16x64xf32, #tpu.memory_space<vmem>>, vector<16x64xf32>
    tpu.vector_store %arg7[%c0_6, %c0_7], %7 {strides = array<i32>} : memref<16x64xf32, #tpu.memory_space<vmem>>, vector<16x64xf32>,
    %c0_i32_8 = arith.constant 0 : i32
    %9 = arith.cmpi eq, %arg2, %c0_i32_8 : i32
    %10 = arith.extui %9 : i1 to i32
    %c0_i32_9 = arith.constant 0 : i32
    %11 = arith.cmpi ne, %10, %c0_i32_9 : i32
    scf.if %11 {
      %c0_10 = arith.constant 0 : index
      %c0_11 = arith.constant 0 : index
      %12 = vector.load %arg7[%c0_10, %c0_11] : memref<16x64xf32, #tpu.memory_space<vmem>>, vector<16x64xf32>
      %c0_12 = arith.constant 0 : index
      %c0_13 = arith.constant 0 : index
      %13 = vector.load %arg5[%c0_12, %c0_13] : memref<1x64xf32, #tpu.memory_space<vmem>>, vector<1x64xf32>
      %14 = vector.broadcast %13 : vector<1x64xf32> to vector<16x64xf32>
      %15 = arith.addf %12, %14 : vector<16x64xf32>
      %16 = arith.truncf %15 : vector<16x64xf32> to vector<16x64xbf16>
      %c0_14 = arith.constant 0 : index
      %c0_15 = arith.constant 0 : index
      %17 = vector.load %arg6[%c0_14, %c0_15] : memref<16x64xbf16, #tpu.memory_space<vmem>>, vector<16x64xbf16>
      tpu.vector_store %arg6[%c0_14, %c0_15], %16 {strides = array<i32>} : memref<16x64xbf16, #tpu.memory_space<vmem>>, vector<16x64xbf16>,
    } else {
    }
    return
  }
  func.func @transform_0(%arg0: i32, %arg1: i32, %arg2: i32) -> (i32, i32) {
    %c0_i32 = arith.constant 0 : i32
    return %arg0, %arg2 : i32, i32
  }
  func.func @transform_1(%arg0: i32, %arg1: i32, %arg2: i32) -> (i32, i32) {
    %c0_i32 = arith.constant 0 : i32
    return %arg2, %arg1 : i32, i32
  }
  func.func @transform_2(%arg0: i32, %arg1: i32, %arg2: i32) -> (i32, i32) {
    %c0_i32 = arith.constant 0 : i32
    %c0_i32_0 = arith.constant 0 : i32
    return %c0_i32, %arg1 : i32, i32
  }
  func.func @transform_3(%arg0: i32, %arg1: i32, %arg2: i32) -> (i32, i32) {
    %c0_i32 = arith.constant 0 : i32
    return %arg0, %arg1 : i32, i32
  }
}

module attributes {stable_mosaic.version = 11 : i64} {
  func.func @_matmul_kernel(%arg0: i32, %arg1: i32, %arg2: i32, %arg3: memref<16x32xbf16, #tpu.memory_space<vmem>>, %arg4: memref<32x32xbf16, #tpu.memory_space<vmem>>, %arg5: memref<1x32xf32, #tpu.memory_space<vmem>>, %arg6: memref<16x32xbf16, #tpu.memory_space<vmem>>, %arg7: memref<16x32xf32, #tpu.memory_space<vmem>>) attributes {dimension_semantics = [#tpu.dimension_semantics<parallel>, #tpu.dimension_semantics<parallel>, #tpu.dimension_semantics<arbitrary>], iteration_bounds = array<i64: 1, 1, 1>, scalar_prefetch = 0 : i64, scratch_operands = 1 : i64, tpu.core_type = #tpu.core_type<tc>, window_params = [{transform_indices = @transform_0, window_bounds = array<i64: 16, 32>}, {transform_indices = @transform_1, window_bounds = array<i64: 32, 32>}, {transform_indices = @transform_2, window_bounds = array<i64: 1, 32>}, {transform_indices = @transform_3, window_bounds = array<i64: 16, 32>}]} {
    %c0_i32 = arith.constant 0 : i32
    %0 = arith.cmpi eq, %arg2, %c0_i32 : i32
    %1 = arith.extui %0 : i1 to i32
    %c0_i32_0 = arith.constant 0 : i32
    %2 = arith.cmpi ne, %1, %c0_i32_0 : i32
    scf.if %2 {
      %cst_10 = arith.constant 0.000000e+00 : f32
      %12 = vector.broadcast %cst_10 : f32 to vector<16x32xf32>
      %c0_11 = arith.constant 0 : index
      %c0_12 = arith.constant 0 : index
      %13 = vector.load %arg7[%c0_11, %c0_12] : memref<16x32xf32, #tpu.memory_space<vmem>>, vector<16x32xf32>
      tpu.vector_store %arg7[%c0_11, %c0_12], %12 {strides = array<i32>} : memref<16x32xf32, #tpu.memory_space<vmem>>, vector<16x32xf32>,
    } else {
    }
    %c0 = arith.constant 0 : index
    %c0_1 = arith.constant 0 : index
    %3 = vector.load %arg7[%c0, %c0_1] : memref<16x32xf32, #tpu.memory_space<vmem>>, vector<16x32xf32>
    %c0_2 = arith.constant 0 : index
    %c0_3 = arith.constant 0 : index
    %4 = vector.load %arg3[%c0_2, %c0_3] : memref<16x32xbf16, #tpu.memory_space<vmem>>, vector<16x32xbf16>
    %c0_4 = arith.constant 0 : index
    %c0_5 = arith.constant 0 : index
    %5 = vector.load %arg4[%c0_4, %c0_5] : memref<32x32xbf16, #tpu.memory_space<vmem>>, vector<32x32xbf16>
    %cst = arith.constant dense<0.000000e+00> : vector<16x32xf32>
    %6 = tpu.matmul %4, %5, %cst {dimension_numbers = #tpu.dot_dimension_numbers<[1], [0], [0], [1], [0, 0, 1, 1], [], []>} : vector<16x32xbf16>, vector<32x32xbf16>, vector<16x32xf32> -> vector<16x32xf32>
    %7 = arith.addf %3, %6 : vector<16x32xf32>
    %c0_6 = arith.constant 0 : index
    %c0_7 = arith.constant 0 : index
    %8 = vector.load %arg7[%c0_6, %c0_7] : memref<16x32xf32, #tpu.memory_space<vmem>>, vector<16x32xf32>
    tpu.vector_store %arg7[%c0_6, %c0_7], %7 {strides = array<i32>} : memref<16x32xf32, #tpu.memory_space<vmem>>, vector<16x32xf32>,
    %c0_i32_8 = arith.constant 0 : i32
    %9 = arith.cmpi eq, %arg2, %c0_i32_8 : i32
    %10 = arith.extui %9 : i1 to i32
    %c0_i32_9 = arith.constant 0 : i32
    %11 = arith.cmpi ne, %10, %c0_i32_9 : i32
    scf.if %11 {
      %c0_10 = arith.constant 0 : index
      %c0_11 = arith.constant 0 : index
      %12 = vector.load %arg7[%c0_10, %c0_11] : memref<16x32xf32, #tpu.memory_space<vmem>>, vector<16x32xf32>
      %c0_12 = arith.constant 0 : index
      %c0_13 = arith.constant 0 : index
      %13 = vector.load %arg5[%c0_12, %c0_13] : memref<1x32xf32, #tpu.memory_space<vmem>>, vector<1x32xf32>
      %14 = vector.broadcast %13 : vector<1x32xf32> to vector<16x32xf32>
      %15 = arith.addf %12, %14 : vector<16x32xf32>
      %16 = arith.truncf %15 : vector<16x32xf32> to vector<16x32xbf16>
      %c0_14 = arith.constant 0 : index
      %c0_15 = arith.constant 0 : index
      %17 = vector.load %arg6[%c0_14, %c0_15] : memref<16x32xbf16, #tpu.memory_space<vmem>>, vector<16x32xbf16>
      tpu.vector_store %arg6[%c0_14, %c0_15], %16 {strides = array<i32>} : memref<16x32xbf16, #tpu.memory_space<vmem>>, vector<16x32xbf16>,
    } else {
    }
    return
  }
  func.func @transform_0(%arg0: i32, %arg1: i32, %arg2: i32) -> (i32, i32) {
    %c0_i32 = arith.constant 0 : i32
    return %arg0, %arg2 : i32, i32
  }
  func.func @transform_1(%arg0: i32, %arg1: i32, %arg2: i32) -> (i32, i32) {
    %c0_i32 = arith.constant 0 : i32
    return %arg2, %arg1 : i32, i32
  }
  func.func @transform_2(%arg0: i32, %arg1: i32, %arg2: i32) -> (i32, i32) {
    %c0_i32 = arith.constant 0 : i32
    %c0_i32_0 = arith.constant 0 : i32
    return %c0_i32, %arg1 : i32, i32
  }
  func.func @transform_3(%arg0: i32, %arg1: i32, %arg2: i32) -> (i32, i32) {
    %c0_i32 = arith.constant 0 : i32
    return %arg0, %arg1 : i32, i32
  }
}

module attributes {stable_mosaic.version = 11 : i64} {
  func.func @_attention_kernel(%arg0: i32, %arg1: i32, %arg2: memref<1x8x32xbf16, #tpu.memory_space<vmem>>, %arg3: memref<1x8x64xbf16, #tpu.memory_space<vmem>>, %arg4: memref<1x8x8xbf16, #tpu.memory_space<vmem>>, %arg5: memref<1x8x32xbf16, #tpu.memory_space<vmem>>) attributes {dimension_semantics = [#tpu.dimension_semantics<parallel>, #tpu.dimension_semantics<parallel>], iteration_bounds = array<i64: 2, 1>, scalar_prefetch = 0 : i64, scratch_operands = 0 : i64, tpu.core_type = #tpu.core_type<tc>, window_params = [{transform_indices = @transform_0, window_bounds = array<i64: 1, 8, 32>}, {transform_indices = @transform_1, window_bounds = array<i64: 1, 8, 64>}, {transform_indices = @transform_2, window_bounds = array<i64: 1, 8, 8>}, {transform_indices = @transform_3, window_bounds = array<i64: 1, 8, 32>}]} {
    %c0 = arith.constant 0 : index
    %c0_0 = arith.constant 0 : index
    %c0_1 = arith.constant 0 : index
    %0 = vector.load %arg4[%c0, %c0_0, %c0_1] : memref<1x8x8xbf16, #tpu.memory_space<vmem>>, vector<1x8x8xbf16>
    %1 = vector.shape_cast %0 : vector<1x8x8xbf16> to vector<8x8xbf16>
    %2 = arith.extf %1 : vector<8x8xbf16> to vector<8x8xf32>
    %c0_2 = arith.constant 0 : index
    %c0_3 = arith.constant 0 : index
    %c0_4 = arith.constant 0 : index
    %3 = vector.load %arg2[%c0_2, %c0_3, %c0_4] : memref<1x8x32xbf16, #tpu.memory_space<vmem>>, vector<1x8x8xbf16>
    %4 = vector.shape_cast %3 : vector<1x8x8xbf16> to vector<8x8xbf16>
    %cst = arith.constant 3.535160e-01 : bf16
    %5 = vector.broadcast %cst : bf16 to vector<8x8xbf16>
    %6 = arith.mulf %4, %5 : vector<8x8xbf16>
    %c0_5 = arith.constant 0 : index
    %c0_6 = arith.constant 0 : index
    %c0_7 = arith.constant 0 : index
    %7 = vector.load %arg3[%c0_5, %c0_6, %c0_7] : memref<1x8x64xbf16, #tpu.memory_space<vmem>>, vector<1x8x8xbf16>
    %8 = vector.shape_cast %7 : vector<1x8x8xbf16> to vector<8x8xbf16>
    %c0_8 = arith.constant 0 : index
    %c0_9 = arith.constant 0 : index
    %c32 = arith.constant 32 : index
    %9 = vector.load %arg3[%c0_8, %c0_9, %c32] : memref<1x8x64xbf16, #tpu.memory_space<vmem>>, vector<1x8x8xbf16>
    %10 = vector.shape_cast %9 : vector<1x8x8xbf16> to vector<8x8xbf16>
    %cst_10 = arith.constant dense<0.000000e+00> : vector<8x8xf32>
    %11 = tpu.matmul %6, %8, %cst_10 {dimension_numbers = #tpu.dot_dimension_numbers<[1], [1], [0], [0], [0, 0, 1, 0], [], []>} : vector<8x8xbf16>, vector<8x8xbf16>, vector<8x8xf32> -> vector<8x8xf32>
    %12 = arith.addf %11, %2 : vector<8x8xf32>
    %cst_11 = arith.constant dense<0xFF800000> : vector<8xf32>
    %13 = vector.multi_reduction <maximumf>, %12, %cst_11 [1] : vector<8x8xf32> to vector<8xf32>
    %14 = vector.shape_cast %13 : vector<8xf32> to vector<8x1xf32>
    %15 = vector.broadcast %14 : vector<8x1xf32> to vector<8x8xf32>
    %16 = arith.subf %12, %15 : vector<8x8xf32>
    %17 = math.exp %16 : vector<8x8xf32>
    %cst_12 = arith.constant dense<0.000000e+00> : vector<8xf32>
    %18 = vector.multi_reduction <add>, %17, %cst_12 [1] : vector<8x8xf32> to vector<8xf32>
    %19 = vector.shape_cast %18 : vector<8xf32> to vector<8x1xf32>
    %20 = tpu.reciprocal %19 {approx = true} : vector<8x1xf32> -> vector<8x1xf32>
    %21 = vector.broadcast %20 : vector<8x1xf32> to vector<8x8xf32>
    %22 = arith.mulf %17, %21 : vector<8x8xf32>
    %23 = arith.truncf %22 : vector<8x8xf32> to vector<8x8xbf16>
    %cst_13 = arith.constant dense<0.000000e+00> : vector<8x8xf32>
    %24 = tpu.matmul %23, %10, %cst_13 {dimension_numbers = #tpu.dot_dimension_numbers<[1], [0], [0], [1], [0, 0, 1, 1], [], []>} : vector<8x8xbf16>, vector<8x8xbf16>, vector<8x8xf32> -> vector<8x8xf32>
    %c0_14 = arith.constant 0 : index
    %c0_15 = arith.constant 0 : index
    %c8 = arith.constant 8 : index
    %25 = vector.load %arg2[%c0_14, %c0_15, %c8] : memref<1x8x32xbf16, #tpu.memory_space<vmem>>, vector<1x8x8xbf16>
    %26 = vector.shape_cast %25 : vector<1x8x8xbf16> to vector<8x8xbf16>
    %cst_16 = arith.constant 3.535160e-01 : bf16
    %27 = vector.broadcast %cst_16 : bf16 to vector<8x8xbf16>
    %28 = arith.mulf %26, %27 : vector<8x8xbf16>
    %c0_17 = arith.constant 0 : index
    %c0_18 = arith.constant 0 : index
    %c8_19 = arith.constant 8 : index
    %29 = vector.load %arg3[%c0_17, %c0_18, %c8_19] : memref<1x8x64xbf16, #tpu.memory_space<vmem>>, vector<1x8x8xbf16>
    %30 = vector.shape_cast %29 : vector<1x8x8xbf16> to vector<8x8xbf16>
    %c0_20 = arith.constant 0 : index
    %c0_21 = arith.constant 0 : index
    %c40 = arith.constant 40 : index
    %31 = vector.load %arg3[%c0_20, %c0_21, %c40] : memref<1x8x64xbf16, #tpu.memory_space<vmem>>, vector<1x8x8xbf16>
    %32 = vector.shape_cast %31 : vector<1x8x8xbf16> to vector<8x8xbf16>
    %cst_22 = arith.constant dense<0.000000e+00> : vector<8x8xf32>
    %33 = tpu.matmul %28, %30, %cst_22 {dimension_numbers = #tpu.dot_dimension_numbers<[1], [1], [0], [0], [0, 0, 1, 0], [], []>} : vector<8x8xbf16>, vector<8x8xbf16>, vector<8x8xf32> -> vector<8x8xf32>
    %34 = arith.addf %33, %2 : vector<8x8xf32>
    %cst_23 = arith.constant dense<0xFF800000> : vector<8xf32>
    %35 = vector.multi_reduction <maximumf>, %34, %cst_23 [1] : vector<8x8xf32> to vector<8xf32>
    %36 = vector.shape_cast %35 : vector<8xf32> to vector<8x1xf32>
    %37 = vector.broadcast %36 : vector<8x1xf32> to vector<8x8xf32>
    %38 = arith.subf %34, %37 : vector<8x8xf32>
    %39 = math.exp %38 : vector<8x8xf32>
    %cst_24 = arith.constant dense<0.000000e+00> : vector<8xf32>
    %40 = vector.multi_reduction <add>, %39, %cst_24 [1] : vector<8x8xf32> to vector<8xf32>
    %41 = vector.shape_cast %40 : vector<8xf32> to vector<8x1xf32>
    %42 = tpu.reciprocal %41 {approx = true} : vector<8x1xf32> -> vector<8x1xf32>
    %43 = vector.broadcast %42 : vector<8x1xf32> to vector<8x8xf32>
    %44 = arith.mulf %39, %43 : vector<8x8xf32>
    %45 = arith.truncf %44 : vector<8x8xf32> to vector<8x8xbf16>
    %cst_25 = arith.constant dense<0.000000e+00> : vector<8x8xf32>
    %46 = tpu.matmul %45, %32, %cst_25 {dimension_numbers = #tpu.dot_dimension_numbers<[1], [0], [0], [1], [0, 0, 1, 1], [], []>} : vector<8x8xbf16>, vector<8x8xbf16>, vector<8x8xf32> -> vector<8x8xf32>
    %c0_26 = arith.constant 0 : index
    %c0_27 = arith.constant 0 : index
    %c16 = arith.constant 16 : index
    %47 = vector.load %arg2[%c0_26, %c0_27, %c16] : memref<1x8x32xbf16, #tpu.memory_space<vmem>>, vector<1x8x8xbf16>
    %48 = vector.shape_cast %47 : vector<1x8x8xbf16> to vector<8x8xbf16>
    %cst_28 = arith.constant 3.535160e-01 : bf16
    %49 = vector.broadcast %cst_28 : bf16 to vector<8x8xbf16>
    %50 = arith.mulf %48, %49 : vector<8x8xbf16>
    %c0_29 = arith.constant 0 : index
    %c0_30 = arith.constant 0 : index
    %c16_31 = arith.constant 16 : index
    %51 = vector.load %arg3[%c0_29, %c0_30, %c16_31] : memref<1x8x64xbf16, #tpu.memory_space<vmem>>, vector<1x8x8xbf16>
    %52 = vector.shape_cast %51 : vector<1x8x8xbf16> to vector<8x8xbf16>
    %c0_32 = arith.constant 0 : index
    %c0_33 = arith.constant 0 : index
    %c48 = arith.constant 48 : index
    %53 = vector.load %arg3[%c0_32, %c0_33, %c48] : memref<1x8x64xbf16, #tpu.memory_space<vmem>>, vector<1x8x8xbf16>
    %54 = vector.shape_cast %53 : vector<1x8x8xbf16> to vector<8x8xbf16>
    %cst_34 = arith.constant dense<0.000000e+00> : vector<8x8xf32>
    %55 = tpu.matmul %50, %52, %cst_34 {dimension_numbers = #tpu.dot_dimension_numbers<[1], [1], [0], [0], [0, 0, 1, 0], [], []>} : vector<8x8xbf16>, vector<8x8xbf16>, vector<8x8xf32> -> vector<8x8xf32>
    %56 = arith.addf %55, %2 : vector<8x8xf32>
    %cst_35 = arith.constant dense<0xFF800000> : vector<8xf32>
    %57 = vector.multi_reduction <maximumf>, %56, %cst_35 [1] : vector<8x8xf32> to vector<8xf32>
    %58 = vector.shape_cast %57 : vector<8xf32> to vector<8x1xf32>
    %59 = vector.broadcast %58 : vector<8x1xf32> to vector<8x8xf32>
    %60 = arith.subf %56, %59 : vector<8x8xf32>
    %61 = math.exp %60 : vector<8x8xf32>
    %cst_36 = arith.constant dense<0.000000e+00> : vector<8xf32>
    %62 = vector.multi_reduction <add>, %61, %cst_36 [1] : vector<8x8xf32> to vector<8xf32>
    %63 = vector.shape_cast %62 : vector<8xf32> to vector<8x1xf32>
    %64 = tpu.reciprocal %63 {approx = true} : vector<8x1xf32> -> vector<8x1xf32>
    %65 = vector.broadcast %64 : vector<8x1xf32> to vector<8x8xf32>
    %66 = arith.mulf %61, %65 : vector<8x8xf32>
    %67 = arith.truncf %66 : vector<8x8xf32> to vector<8x8xbf16>
    %cst_37 = arith.constant dense<0.000000e+00> : vector<8x8xf32>
    %68 = tpu.matmul %67, %54, %cst_37 {dimension_numbers = #tpu.dot_dimension_numbers<[1], [0], [0], [1], [0, 0, 1, 1], [], []>} : vector<8x8xbf16>, vector<8x8xbf16>, vector<8x8xf32> -> vector<8x8xf32>
    %c0_38 = arith.constant 0 : index
    %c0_39 = arith.constant 0 : index
    %c24 = arith.constant 24 : index
    %69 = vector.load %arg2[%c0_38, %c0_39, %c24] : memref<1x8x32xbf16, #tpu.memory_space<vmem>>, vector<1x8x8xbf16>
    %70 = vector.shape_cast %69 : vector<1x8x8xbf16> to vector<8x8xbf16>
    %cst_40 = arith.constant 3.535160e-01 : bf16
    %71 = vector.broadcast %cst_40 : bf16 to vector<8x8xbf16>
    %72 = arith.mulf %70, %71 : vector<8x8xbf16>
    %c0_41 = arith.constant 0 : index
    %c0_42 = arith.constant 0 : index
    %c24_43 = arith.constant 24 : index
    %73 = vector.load %arg3[%c0_41, %c0_42, %c24_43] : memref<1x8x64xbf16, #tpu.memory_space<vmem>>, vector<1x8x8xbf16>
    %74 = vector.shape_cast %73 : vector<1x8x8xbf16> to vector<8x8xbf16>
    %c0_44 = arith.constant 0 : index
    %c0_45 = arith.constant 0 : index
    %c56 = arith.constant 56 : index
    %75 = vector.load %arg3[%c0_44, %c0_45, %c56] : memref<1x8x64xbf16, #tpu.memory_space<vmem>>, vector<1x8x8xbf16>
    %76 = vector.shape_cast %75 : vector<1x8x8xbf16> to vector<8x8xbf16>
    %cst_46 = arith.constant dense<0.000000e+00> : vector<8x8xf32>
    %77 = tpu.matmul %72, %74, %cst_46 {dimension_numbers = #tpu.dot_dimension_numbers<[1], [1], [0], [0], [0, 0, 1, 0], [], []>} : vector<8x8xbf16>, vector<8x8xbf16>, vector<8x8xf32> -> vector<8x8xf32>
    %78 = arith.addf %77, %2 : vector<8x8xf32>
    %cst_47 = arith.constant dense<0xFF800000> : vector<8xf32>
    %79 = vector.multi_reduction <maximumf>, %78, %cst_47 [1] : vector<8x8xf32> to vector<8xf32>
    %80 = vector.shape_cast %79 : vector<8xf32> to vector<8x1xf32>
    %81 = vector.broadcast %80 : vector<8x1xf32> to vector<8x8xf32>
    %82 = arith.subf %78, %81 : vector<8x8xf32>
    %83 = math.exp %82 : vector<8x8xf32>
    %cst_48 = arith.constant dense<0.000000e+00> : vector<8xf32>
    %84 = vector.multi_reduction <add>, %83, %cst_48 [1] : vector<8x8xf32> to vector<8xf32>
    %85 = vector.shape_cast %84 : vector<8xf32> to vector<8x1xf32>
    %86 = tpu.reciprocal %85 {approx = true} : vector<8x1xf32> -> vector<8x1xf32>
    %87 = vector.broadcast %86 : vector<8x1xf32> to vector<8x8xf32>
    %88 = arith.mulf %83, %87 : vector<8x8xf32>
    %89 = arith.truncf %88 : vector<8x8xf32> to vector<8x8xbf16>
    %cst_49 = arith.constant dense<0.000000e+00> : vector<8x8xf32>
    %90 = tpu.matmul %89, %76, %cst_49 {dimension_numbers = #tpu.dot_dimension_numbers<[1], [0], [0], [1], [0, 0, 1, 1], [], []>} : vector<8x8xbf16>, vector<8x8xbf16>, vector<8x8xf32> -> vector<8x8xf32>
    %91 = tpu.concatenate %24, %46, %68, %90 in 1 : vector<8x8xf32>, vector<8x8xf32>, vector<8x8xf32>, vector<8x8xf32> -> vector<8x32xf32>
    %92 = arith.truncf %91 : vector<8x32xf32> to vector<8x32xbf16>
    %c0_50 = arith.constant 0 : index
    %c0_51 = arith.constant 0 : index
    %c0_52 = arith.constant 0 : index
    %93 = vector.load %arg5[%c0_50, %c0_51, %c0_52] : memref<1x8x32xbf16, #tpu.memory_space<vmem>>, vector<1x8x32xbf16>
    %94 = vector.shape_cast %93 : vector<1x8x32xbf16> to vector<8x32xbf16>
    %95 = vector.shape_cast %92 : vector<8x32xbf16> to vector<1x8x32xbf16>
    tpu.vector_store %arg5[%c0_50, %c0_51, %c0_52], %95 {strides = array<i32>} : memref<1x8x32xbf16, #tpu.memory_space<vmem>>, vector<1x8x32xbf16>,
    return
  }
  func.func @transform_0(%arg0: i32, %arg1: i32) -> (i32, i32, i32) {
    %c0_i32 = arith.constant 0 : i32
    %c0_i32_0 = arith.constant 0 : i32
    return %arg0, %arg1, %c0_i32 : i32, i32, i32
  }
  func.func @transform_1(%arg0: i32, %arg1: i32) -> (i32, i32, i32) {
    %c0_i32 = arith.constant 0 : i32
    %c0_i32_0 = arith.constant 0 : i32
    %c0_i32_1 = arith.constant 0 : i32
    return %arg0, %c0_i32, %c0_i32_0 : i32, i32, i32
  }
  func.func @transform_2(%arg0: i32, %arg1: i32) -> (i32, i32, i32) {
    %c0_i32 = arith.constant 0 : i32
    %c0_i32_0 = arith.constant 0 : i32
    return %arg0, %arg1, %c0_i32 : i32, i32, i32
  }
  func.func @transform_3(%arg0: i32, %arg1: i32) -> (i32, i32, i32) {
    %c0_i32 = arith.constant 0 : i32
    %c0_i32_0 = arith.constant 0 : i32
    return %arg0, %arg1, %c0_i32 : i32, i32, i32
  }
}

module attributes {stable_mosaic.version = 11 : i64} {
  func.func @_matmul_res_ln_kernel(%arg0: i32, %arg1: i32, %arg2: memref<16x32xbf16, #tpu.memory_space<vmem>>, %arg3: memref<32x32xbf16, #tpu.memory_space<vmem>>, %arg4: memref<1x32xf32, #tpu.memory_space<vmem>>, %arg5: memref<16x32xbf16, #tpu.memory_space<vmem>>, %arg6: memref<1x32xf32, #tpu.memory_space<vmem>>, %arg7: memref<1x32xf32, #tpu.memory_space<vmem>>, %arg8: memref<16x32xbf16, #tpu.memory_space<vmem>>, %arg9: memref<16x32xf32, #tpu.memory_space<vmem>>) attributes {dimension_semantics = [#tpu.dimension_semantics<parallel>, #tpu.dimension_semantics<arbitrary>], iteration_bounds = array<i64: 1, 1>, scalar_prefetch = 0 : i64, scratch_operands = 1 : i64, tpu.core_type = #tpu.core_type<tc>, window_params = [{transform_indices = @transform_0, window_bounds = array<i64: 16, 32>}, {transform_indices = @transform_1, window_bounds = array<i64: 32, 32>}, {pipeline_mode = #tpu.pipeline_mode<synchronous>, transform_indices = @transform_2, window_bounds = array<i64: 1, 32>}, {transform_indices = @transform_3, window_bounds = array<i64: 16, 32>}, {pipeline_mode = #tpu.pipeline_mode<synchronous>, transform_indices = @transform_4, window_bounds = array<i64: 1, 32>}, {pipeline_mode = #tpu.pipeline_mode<synchronous>, transform_indices = @transform_5, window_bounds = array<i64: 1, 32>}, {transform_indices = @transform_6, window_bounds = array<i64: 16, 32>}]} {
    %c0_i32 = arith.constant 0 : i32
    %0 = arith.cmpi eq, %arg1, %c0_i32 : i32
    %1 = arith.extui %0 : i1 to i32
    %c0_i32_0 = arith.constant 0 : i32
    %2 = arith.cmpi ne, %1, %c0_i32_0 : i32
    scf.if %2 {
      %cst_10 = arith.constant 0.000000e+00 : f32
      %12 = vector.broadcast %cst_10 : f32 to vector<16x32xf32>
      %c0_11 = arith.constant 0 : index
      %c0_12 = arith.constant 0 : index
      %13 = vector.load %arg9[%c0_11, %c0_12] : memref<16x32xf32, #tpu.memory_space<vmem>>, vector<16x32xf32>
      tpu.vector_store %arg9[%c0_11, %c0_12], %12 {strides = array<i32>} : memref<16x32xf32, #tpu.memory_space<vmem>>, vector<16x32xf32>,
    } else {
    }
    %c0 = arith.constant 0 : index
    %c0_1 = arith.constant 0 : index
    %3 = vector.load %arg9[%c0, %c0_1] : memref<16x32xf32, #tpu.memory_space<vmem>>, vector<16x32xf32>
    %c0_2 = arith.constant 0 : index
    %c0_3 = arith.constant 0 : index
    %4 = vector.load %arg2[%c0_2, %c0_3] : memref<16x32xbf16, #tpu.memory_space<vmem>>, vector<16x32xbf16>
    %c0_4 = arith.constant 0 : index
    %c0_5 = arith.constant 0 : index
    %5 = vector.load %arg3[%c0_4, %c0_5] : memref<32x32xbf16, #tpu.memory_space<vmem>>, vector<32x32xbf16>
    %cst = arith.constant dense<0.000000e+00> : vector<16x32xf32>
    %6 = tpu.matmul %4, %5, %cst {dimension_numbers = #tpu.dot_dimension_numbers<[1], [0], [0], [1], [0, 0, 1, 1], [], []>} : vector<16x32xbf16>, vector<32x32xbf16>, vector<16x32xf32> -> vector<16x32xf32>
    %7 = arith.addf %3, %6 : vector<16x32xf32>
    %c0_6 = arith.constant 0 : index
    %c0_7 = arith.constant 0 : index
    %8 = vector.load %arg9[%c0_6, %c0_7] : memref<16x32xf32, #tpu.memory_space<vmem>>, vector<16x32xf32>
    tpu.vector_store %arg9[%c0_6, %c0_7], %7 {strides = array<i32>} : memref<16x32xf32, #tpu.memory_space<vmem>>, vector<16x32xf32>,
    %c0_i32_8 = arith.constant 0 : i32
    %9 = arith.cmpi eq, %arg1, %c0_i32_8 : i32
    %10 = arith.extui %9 : i1 to i32
    %c0_i32_9 = arith.constant 0 : i32
    %11 = arith.cmpi ne, %10, %c0_i32_9 : i32
    scf.if %11 {
      %c0_10 = arith.constant 0 : index
      %c0_11 = arith.constant 0 : index
      %12 = vector.load %arg9[%c0_10, %c0_11] : memref<16x32xf32, #tpu.memory_space<vmem>>, vector<16x32xf32>
      %c0_12 = arith.constant 0 : index
      %c0_13 = arith.constant 0 : index
      %13 = vector.load %arg4[%c0_12, %c0_13] : memref<1x32xf32, #tpu.memory_space<vmem>>, vector<1x32xf32>
      %14 = vector.broadcast %13 : vector<1x32xf32> to vector<16x32xf32>
      %15 = arith.addf %12, %14 : vector<16x32xf32>
      %c0_14 = arith.constant 0 : index
      %c0_15 = arith.constant 0 : index
      %16 = vector.load %arg5[%c0_14, %c0_15] : memref<16x32xbf16, #tpu.memory_space<vmem>>, vector<16x32xbf16>
      %17 = arith.extf %16 : vector<16x32xbf16> to vector<16x32xf32>
      %18 = arith.addf %15, %17 : vector<16x32xf32>
      %cst_16 = arith.constant dense<0.000000e+00> : vector<16xf32>
      %19 = vector.multi_reduction <add>, %18, %cst_16 [1] : vector<16x32xf32> to vector<16xf32>
      %20 = vector.shape_cast %19 : vector<16xf32> to vector<16x1xf32>
      %cst_17 = arith.constant 3.200000e+01 : f32
      %21 = vector.broadcast %cst_17 : f32 to vector<16x1xf32>
      %22 = arith.divf %20, %21 : vector<16x1xf32>
      %23 = vector.broadcast %22 : vector<16x1xf32> to vector<16x32xf32>
      %24 = arith.subf %18, %23 : vector<16x32xf32>
      %25 = arith.mulf %24, %24 : vector<16x32xf32>
      %cst_18 = arith.constant dense<0.000000e+00> : vector<16xf32>
      %26 = vector.multi_reduction <add>, %25, %cst_18 [1] : vector<16x32xf32> to vector<16xf32>
      %27 = vector.shape_cast %26 : vector<16xf32> to vector<16x1xf32>
      %cst_19 = arith.constant 0.0322580636 : f32
      %28 = vector.broadcast %cst_19 : f32 to vector<16x1xf32>
      %29 = arith.mulf %27, %28 : vector<16x1xf32>
      %30 = math.sqrt %29 : vector<16x1xf32>
      %cst_20 = arith.constant 9.99999997E-7 : f32
      %31 = vector.broadcast %cst_20 : f32 to vector<16x1xf32>
      %32 = arith.addf %30, %31 : vector<16x1xf32>
      %33 = tpu.reciprocal %32 {approx = true} : vector<16x1xf32> -> vector<16x1xf32>
      %c0_21 = arith.constant 0 : index
      %c0_22 = arith.constant 0 : index
      %34 = vector.load %arg6[%c0_21, %c0_22] : memref<1x32xf32, #tpu.memory_space<vmem>>, vector<1x32xf32>
      %35 = vector.broadcast %34 : vector<1x32xf32> to vector<16x32xf32>
      %36 = arith.mulf %35, %24 : vector<16x32xf32>
      %37 = vector.broadcast %33 : vector<16x1xf32> to vector<16x32xf32>
      %38 = arith.mulf %36, %37 : vector<16x32xf32>
      %c0_23 = arith.constant 0 : index
      %c0_24 = arith.constant 0 : index
      %39 = vector.load %arg7[%c0_23, %c0_24] : memref<1x32xf32, #tpu.memory_space<vmem>>, vector<1x32xf32>
      %40 = vector.broadcast %39 : vector<1x32xf32> to vector<16x32xf32>
      %41 = arith.addf %38, %40 : vector<16x32xf32>
      %42 = arith.truncf %41 : vector<16x32xf32> to vector<16x32xbf16>
      %c0_25 = arith.constant 0 : index
      %c0_26 = arith.constant 0 : index
      %43 = vector.load %arg8[%c0_25, %c0_26] : memref<16x32xbf16, #tpu.memory_space<vmem>>, vector<16x32xbf16>
      tpu.vector_store %arg8[%c0_25, %c0_26], %42 {strides = array<i32>} : memref<16x32xbf16, #tpu.memory_space<vmem>>, vector<16x32xbf16>,
    } else {
    }
    return
  }
  func.func @transform_0(%arg0: i32, %arg1: i32) -> (i32, i32) {
    %c0_i32 = arith.constant 0 : i32
    return %arg0, %arg1 : i32, i32
  }
  func.func @transform_1(%arg0: i32, %arg1: i32) -> (i32, i32) {
    %c0_i32 = arith.constant 0 : i32
    %c0_i32_0 = arith.constant 0 : i32
    return %arg1, %c0_i32 : i32, i32
  }
  func.func @transform_2(%arg0: i32, %arg1: i32) -> (i32, i32) {
    %c0_i32 = arith.constant 0 : i32
    %c0_i32_0 = arith.constant 0 : i32
    %c0_i32_1 = arith.constant 0 : i32
    return %c0_i32, %c0_i32_0 : i32, i32
  }
  func.func @transform_3(%arg0: i32, %arg1: i32) -> (i32, i32) {
    %c0_i32 = arith.constant 0 : i32
    %c0_i32_0 = arith.constant 0 : i32
    return %arg0, %c0_i32 : i32, i32
  }
  func.func @transform_4(%arg0: i32, %arg1: i32) -> (i32, i32) {
    %c0_i32 = arith.constant 0 : i32
    %c0_i32_0 = arith.constant 0 : i32
    %c0_i32_1 = arith.constant 0 : i32
    return %c0_i32, %c0_i32_0 : i32, i32
  }
  func.func @transform_5(%arg0: i32, %arg1: i32) -> (i32, i32) {
    %c0_i32 = arith.constant 0 : i32
    %c0_i32_0 = arith.constant 0 : i32
    %c0_i32_1 = arith.constant 0 : i32
    return %c0_i32, %c0_i32_0 : i32, i32
  }
  func.func @transform_6(%arg0: i32, %arg1: i32) -> (i32, i32) {
    %c0_i32 = arith.constant 0 : i32
    %c0_i32_0 = arith.constant 0 : i32
    return %arg0, %c0_i32 : i32, i32
  }
}

module attributes {stable_mosaic.version = 11 : i64} {
  func.func @_matmul_kernel(%arg0: i32, %arg1: i32, %arg2: i32, %arg3: memref<16x32xbf16, #tpu.memory_space<vmem>>, %arg4: memref<32x64xbf16, #tpu.memory_space<vmem>>, %arg5: memref<1x64xf32, #tpu.memory_space<vmem>>, %arg6: memref<16x64xbf16, #tpu.memory_space<vmem>>, %arg7: memref<16x64xf32, #tpu.memory_space<vmem>>) attributes {dimension_semantics = [#tpu.dimension_semantics<parallel>, #tpu.dimension_semantics<parallel>, #tpu.dimension_semantics<arbitrary>], iteration_bounds = array<i64: 1, 1, 1>, scalar_prefetch = 0 : i64, scratch_operands = 1 : i64, tpu.core_type = #tpu.core_type<tc>, window_params = [{transform_indices = @transform_0, window_bounds = array<i64: 16, 32>}, {transform_indices = @transform_1, window_bounds = array<i64: 32, 64>}, {transform_indices = @transform_2, window_bounds = array<i64: 1, 64>}, {transform_indices = @transform_3, window_bounds = array<i64: 16, 64>}]} {
    %c0_i32 = arith.constant 0 : i32
    %0 = arith.cmpi eq, %arg2, %c0_i32 : i32
    %1 = arith.extui %0 : i1 to i32
    %c0_i32_0 = arith.constant 0 : i32
    %2 = arith.cmpi ne, %1, %c0_i32_0 : i32
    scf.if %2 {
      %cst_10 = arith.constant 0.000000e+00 : f32
      %12 = vector.broadcast %cst_10 : f32 to vector<16x64xf32>
      %c0_11 = arith.constant 0 : index
      %c0_12 = arith.constant 0 : index
      %13 = vector.load %arg7[%c0_11, %c0_12] : memref<16x64xf32, #tpu.memory_space<vmem>>, vector<16x64xf32>
      tpu.vector_store %arg7[%c0_11, %c0_12], %12 {strides = array<i32>} : memref<16x64xf32, #tpu.memory_space<vmem>>, vector<16x64xf32>,
    } else {
    }
    %c0 = arith.constant 0 : index
    %c0_1 = arith.constant 0 : index
    %3 = vector.load %arg7[%c0, %c0_1] : memref<16x64xf32, #tpu.memory_space<vmem>>, vector<16x64xf32>
    %c0_2 = arith.constant 0 : index
    %c0_3 = arith.constant 0 : index
    %4 = vector.load %arg3[%c0_2, %c0_3] : memref<16x32xbf16, #tpu.memory_space<vmem>>, vector<16x32xbf16>
    %c0_4 = arith.constant 0 : index
    %c0_5 = arith.constant 0 : index
    %5 = vector.load %arg4[%c0_4, %c0_5] : memref<32x64xbf16, #tpu.memory_space<vmem>>, vector<32x64xbf16>
    %cst = arith.constant dense<0.000000e+00> : vector<16x64xf32>
    %6 = tpu.matmul %4, %5, %cst {dimension_numbers = #tpu.dot_dimension_numbers<[1], [0], [0], [1], [0, 0, 1, 1], [], []>} : vector<16x32xbf16>, vector<32x64xbf16>, vector<16x64xf32> -> vector<16x64xf32>
    %7 = arith.addf %3, %6 : vector<16x64xf32>
    %c0_6 = arith.constant 0 : index
    %c0_7 = arith.constant 0 : index
    %8 = vector.load %arg7[%c0_6, %c0_7] : memref<16x64xf32, #tpu.memory_space<vmem>>, vector<16x64xf32>
    tpu.vector_store %arg7[%c0_6, %c0_7], %7 {strides = array<i32>} : memref<16x64xf32, #tpu.memory_space<vmem>>, vector<16x64xf32>,
    %c0_i32_8 = arith.constant 0 : i32
    %9 = arith.cmpi eq, %arg2, %c0_i32_8 : i32
    %10 = arith.extui %9 : i1 to i32
    %c0_i32_9 = arith.constant 0 : i32
    %11 = arith.cmpi ne, %10, %c0_i32_9 : i32
    scf.if %11 {
      %c0_10 = arith.constant 0 : index
      %c0_11 = arith.constant 0 : index
      %12 = vector.load %arg7[%c0_10, %c0_11] : memref<16x64xf32, #tpu.memory_space<vmem>>, vector<16x64xf32>
      %c0_12 = arith.constant 0 : index
      %c0_13 = arith.constant 0 : index
      %13 = vector.load %arg5[%c0_12, %c0_13] : memref<1x64xf32, #tpu.memory_space<vmem>>, vector<1x64xf32>
      %14 = vector.broadcast %13 : vector<1x64xf32> to vector<16x64xf32>
      %15 = arith.addf %12, %14 : vector<16x64xf32>
      %cst_14 = arith.constant 0.000000e+00 : f32
      %16 = vector.broadcast %cst_14 : f32 to vector<16x64xf32>
      %17 = arith.maximumf %15, %16 : vector<16x64xf32>
      %18 = arith.truncf %17 : vector<16x64xf32> to vector<16x64xbf16>
      %c0_15 = arith.constant 0 : index
      %c0_16 = arith.constant 0 : index
      %19 = vector.load %arg6[%c0_15, %c0_16] : memref<16x64xbf16, #tpu.memory_space<vmem>>, vector<16x64xbf16>
      tpu.vector_store %arg6[%c0_15, %c0_16], %18 {strides = array<i32>} : memref<16x64xbf16, #tpu.memory_space<vmem>>, vector<16x64xbf16>,
    } else {
    }
    return
  }
  func.func @transform_0(%arg0: i32, %arg1: i32, %arg2: i32) -> (i32, i32) {
    %c0_i32 = arith.constant 0 : i32
    return %arg0, %arg2 : i32, i32
  }
  func.func @transform_1(%arg0: i32, %arg1: i32, %arg2: i32) -> (i32, i32) {
    %c0_i32 = arith.constant 0 : i32
    return %arg2, %arg1 : i32, i32
  }
  func.func @transform_2(%arg0: i32, %arg1: i32, %arg2: i32) -> (i32, i32) {
    %c0_i32 = arith.constant 0 : i32
    %c0_i32_0 = arith.constant 0 : i32
    return %c0_i32, %arg1 : i32, i32
  }
  func.func @transform_3(%arg0: i32, %arg1: i32, %arg2: i32) -> (i32, i32) {
    %c0_i32 = arith.constant 0 : i32
    return %arg0, %arg1 : i32, i32
  }
}

module attributes {stable_mosaic.version = 11 : i64} {
  func.func @_matmul_tb_kernel(%arg0: i32, %arg1: i32, %arg2: i32, %arg3: memref<16x32xbf16, #tpu.memory_space<vmem>>, %arg4: memref<16x32xbf16, #tpu.memory_space<vmem>>, %arg5: memref<1x16xf32, #tpu.memory_space<vmem>>, %arg6: memref<16x16xf32, #tpu.memory_space<vmem>>, %arg7: memref<16x16xf32, #tpu.memory_space<vmem>>) attributes {dimension_semantics = [#tpu.dimension_semantics<parallel>, #tpu.dimension_semantics<parallel>, #tpu.dimension_semantics<arbitrary>], iteration_bounds = array<i64: 1, 1, 1>, scalar_prefetch = 0 : i64, scratch_operands = 1 : i64, tpu.core_type = #tpu.core_type<tc>, window_params = [{transform_indices = @transform_0, window_bounds = array<i64: 16, 32>}, {transform_indices = @transform_1, window_bounds = array<i64: 16, 32>}, {transform_indices = @transform_2, window_bounds = array<i64: 1, 16>}, {transform_indices = @transform_3, window_bounds = array<i64: 16, 16>}]} {
    %c0_i32 = arith.constant 0 : i32
    %0 = arith.cmpi eq, %arg2, %c0_i32 : i32
    %1 = arith.extui %0 : i1 to i32
    %c0_i32_0 = arith.constant 0 : i32
    %2 = arith.cmpi ne, %1, %c0_i32_0 : i32
    scf.if %2 {
      %cst_10 = arith.constant 0.000000e+00 : f32
      %12 = vector.broadcast %cst_10 : f32 to vector<16x16xf32>
      %c0_11 = arith.constant 0 : index
      %c0_12 = arith.constant 0 : index
      %13 = vector.load %arg7[%c0_11, %c0_12] : memref<16x16xf32, #tpu.memory_space<vmem>>, vector<16x16xf32>
      tpu.vector_store %arg7[%c0_11, %c0_12], %12 {strides = array<i32>} : memref<16x16xf32, #tpu.memory_space<vmem>>, vector<16x16xf32>,
    } else {
    }
    %c0 = arith.constant 0 : index
    %c0_1 = arith.constant 0 : index
    %3 = vector.load %arg7[%c0, %c0_1] : memref<16x16xf32, #tpu.memory_space<vmem>>, vector<16x16xf32>
    %c0_2 = arith.constant 0 : index
    %c0_3 = arith.constant 0 : index
    %4 = vector.load %arg3[%c0_2, %c0_3] : memref<16x32xbf16, #tpu.memory_space<vmem>>, vector<16x32xbf16>
    %c0_4 = arith.constant 0 : index
    %c0_5 = arith.constant 0 : index
    %5 = vector.load %arg4[%c0_4, %c0_5] : memref<16x32xbf16, #tpu.memory_space<vmem>>, vector<16x32xbf16>
    %cst = arith.constant dense<0.000000e+00> : vector<16x16xf32>
    %6 = tpu.matmul %4, %5, %cst {dimension_numbers = #tpu.dot_dimension_numbers<[1], [1], [0], [0], [0, 0, 1, 0], [], []>} : vector<16x32xbf16>, vector<16x32xbf16>, vector<16x16xf32> -> vector<16x16xf32>
    %7 = arith.addf %3, %6 : vector<16x16xf32>
    %c0_6 = arith.constant 0 : index
    %c0_7 = arith.constant 0 : index
    %8 = vector.load %arg7[%c0_6, %c0_7] : memref<16x16xf32, #tpu.memory_space<vmem>>, vector<16x16xf32>
    tpu.vector_store %arg7[%c0_6, %c0_7], %7 {strides = array<i32>} : memref<16x16xf32, #tpu.memory_space<vmem>>, vector<16x16xf32>,
    %c0_i32_8 = arith.constant 0 : i32
    %9 = arith.cmpi eq, %arg2, %c0_i32_8 : i32
    %10 = arith.extui %9 : i1 to i32
    %c0_i32_9 = arith.constant 0 : i32
    %11 = arith.cmpi ne, %10, %c0_i32_9 : i32
    scf.if %11 {
      %c0_10 = arith.constant 0 : index
      %c0_11 = arith.constant 0 : index
      %12 = vector.load %arg7[%c0_10, %c0_11] : memref<16x16xf32, #tpu.memory_space<vmem>>, vector<16x16xf32>
      %c0_12 = arith.constant 0 : index
      %c0_13 = arith.constant 0 : index
      %13 = vector.load %arg5[%c0_12, %c0_13] : memref<1x16xf32, #tpu.memory_space<vmem>>, vector<1x16xf32>
      %14 = vector.broadcast %13 : vector<1x16xf32> to vector<16x16xf32>
      %15 = arith.addf %12, %14 : vector<16x16xf32>
      %c0_14 = arith.constant 0 : index
      %c0_15 = arith.constant 0 : index
      %16 = vector.load %arg6[%c0_14, %c0_15] : memref<16x16xf32, #tpu.memory_space<vmem>>, vector<16x16xf32>
      tpu.vector_store %arg6[%c0_14, %c0_15], %15 {strides = array<i32>} : memref<16x16xf32, #tpu.memory_space<vmem>>, vector<16x16xf32>,
    } else {
    }
    return
  }
  func.func @transform_0(%arg0: i32, %arg1: i32, %arg2: i32) -> (i32, i32) {
    %c0_i32 = arith.constant 0 : i32
    return %arg0, %arg2 : i32, i32
  }
  func.func @transform_1(%arg0: i32, %arg1: i32, %arg2: i32) -> (i32, i32) {
    %c0_i32 = arith.constant 0 : i32
    return %arg1, %arg2 : i32, i32
  }
  func.func @transform_2(%arg0: i32, %arg1: i32, %arg2: i32) -> (i32, i32) {
    %c0_i32 = arith.constant 0 : i32
    %c0_i32_0 = arith.constant 0 : i32
    return %c0_i32, %arg1 : i32, i32
  }
  func.func @transform_3(%arg0: i32, %arg1: i32, %arg2: i32) -> (i32, i32) {
    %c0_i32 = arith.constant 0 : i32
    return %arg0, %arg1 : i32, i32
  }
}

module attributes {stable_mosaic.version = 11 : i64} {
  func.func @_matmul_res_ln_kernel(%arg0: i32, %arg1: i32, %arg2: memref<16x64xbf16, #tpu.memory_space<vmem>>, %arg3: memref<64x32xbf16, #tpu.memory_space<vmem>>, %arg4: memref<1x32xf32, #tpu.memory_space<vmem>>, %arg5: memref<16x32xbf16, #tpu.memory_space<vmem>>, %arg6: memref<1x32xf32, #tpu.memory_space<vmem>>, %arg7: memref<1x32xf32, #tpu.memory_space<vmem>>, %arg8: memref<16x32xbf16, #tpu.memory_space<vmem>>, %arg9: memref<16x32xf32, #tpu.memory_space<vmem>>) attributes {dimension_semantics = [#tpu.dimension_semantics<parallel>, #tpu.dimension_semantics<arbitrary>], iteration_bounds = array<i64: 1, 1>, scalar_prefetch = 0 : i64, scratch_operands = 1 : i64, tpu.core_type = #tpu.core_type<tc>, window_params = [{transform_indices = @transform_0, window_bounds = array<i64: 16, 64>}, {transform_indices = @transform_1, window_bounds = array<i64: 64, 32>}, {pipeline_mode = #tpu.pipeline_mode<synchronous>, transform_indices = @transform_2, window_bounds = array<i64: 1, 32>}, {transform_indices = @transform_3, window_bounds = array<i64: 16, 32>}, {pipeline_mode = #tpu.pipeline_mode<synchronous>, transform_indices = @transform_4, window_bounds = array<i64: 1, 32>}, {pipeline_mode = #tpu.pipeline_mode<synchronous>, transform_indices = @transform_5, window_bounds = array<i64: 1, 32>}, {transform_indices = @transform_6, window_bounds = array<i64: 16, 32>}]} {
    %c0_i32 = arith.constant 0 : i32
    %0 = arith.cmpi eq, %arg1, %c0_i32 : i32
    %1 = arith.extui %0 : i1 to i32
    %c0_i32_0 = arith.constant 0 : i32
    %2 = arith.cmpi ne, %1, %c0_i32_0 : i32
    scf.if %2 {
      %cst_10 = arith.constant 0.000000e+00 : f32
      %12 = vector.broadcast %cst_10 : f32 to vector<16x32xf32>
      %c0_11 = arith.constant 0 : index
      %c0_12 = arith.constant 0 : index
      %13 = vector.load %arg9[%c0_11, %c0_12] : memref<16x32xf32, #tpu.memory_space<vmem>>, vector<16x32xf32>
      tpu.vector_store %arg9[%c0_11, %c0_12], %12 {strides = array<i32>} : memref<16x32xf32, #tpu.memory_space<vmem>>, vector<16x32xf32>,
    } else {
    }
    %c0 = arith.constant 0 : index
    %c0_1 = arith.constant 0 : index
    %3 = vector.load %arg9[%c0, %c0_1] : memref<16x32xf32, #tpu.memory_space<vmem>>, vector<16x32xf32>
    %c0_2 = arith.constant 0 : index
    %c0_3 = arith.constant 0 : index
    %4 = vector.load %arg2[%c0_2, %c0_3] : memref<16x64xbf16, #tpu.memory_space<vmem>>, vector<16x64xbf16>
    %c0_4 = arith.constant 0 : index
    %c0_5 = arith.constant 0 : index
    %5 = vector.load %arg3[%c0_4, %c0_5] : memref<64x32xbf16, #tpu.memory_space<vmem>>, vector<64x32xbf16>
    %cst = arith.constant dense<0.000000e+00> : vector<16x32xf32>
    %6 = tpu.matmul %4, %5, %cst {dimension_numbers = #tpu.dot_dimension_numbers<[1], [0], [0], [1], [0, 0, 1, 1], [], []>} : vector<16x64xbf16>, vector<64x32xbf16>, vector<16x32xf32> -> vector<16x32xf32>
    %7 = arith.addf %3, %6 : vector<16x32xf32>
    %c0_6 = arith.constant 0 : index
    %c0_7 = arith.constant 0 : index
    %8 = vector.load %arg9[%c0_6, %c0_7] : memref<16x32xf32, #tpu.memory_space<vmem>>, vector<16x32xf32>
    tpu.vector_store %arg9[%c0_6, %c0_7], %7 {strides = array<i32>} : memref<16x32xf32, #tpu.memory_space<vmem>>, vector<16x32xf32>,
    %c0_i32_8 = arith.constant 0 : i32
    %9 = arith.cmpi eq, %arg1, %c0_i32_8 : i32
    %10 = arith.extui %9 : i1 to i32
    %c0_i32_9 = arith.constant 0 : i32
    %11 = arith.cmpi ne, %10, %c0_i32_9 : i32
    scf.if %11 {
      %c0_10 = arith.constant 0 : index
      %c0_11 = arith.constant 0 : index
      %12 = vector.load %arg9[%c0_10, %c0_11] : memref<16x32xf32, #tpu.memory_space<vmem>>, vector<16x32xf32>
      %c0_12 = arith.constant 0 : index
      %c0_13 = arith.constant 0 : index
      %13 = vector.load %arg4[%c0_12, %c0_13] : memref<1x32xf32, #tpu.memory_space<vmem>>, vector<1x32xf32>
      %14 = vector.broadcast %13 : vector<1x32xf32> to vector<16x32xf32>
      %15 = arith.addf %12, %14 : vector<16x32xf32>
      %c0_14 = arith.constant 0 : index
      %c0_15 = arith.constant 0 : index
      %16 = vector.load %arg5[%c0_14, %c0_15] : memref<16x32xbf16, #tpu.memory_space<vmem>>, vector<16x32xbf16>
      %17 = arith.extf %16 : vector<16x32xbf16> to vector<16x32xf32>
      %18 = arith.addf %15, %17 : vector<16x32xf32>
      %cst_16 = arith.constant dense<0.000000e+00> : vector<16xf32>
      %19 = vector.multi_reduction <add>, %18, %cst_16 [1] : vector<16x32xf32> to vector<16xf32>
      %20 = vector.shape_cast %19 : vector<16xf32> to vector<16x1xf32>
      %cst_17 = arith.constant 3.200000e+01 : f32
      %21 = vector.broadcast %cst_17 : f32 to vector<16x1xf32>
      %22 = arith.divf %20, %21 : vector<16x1xf32>
      %23 = vector.broadcast %22 : vector<16x1xf32> to vector<16x32xf32>
      %24 = arith.subf %18, %23 : vector<16x32xf32>
      %25 = arith.mulf %24, %24 : vector<16x32xf32>
      %cst_18 = arith.constant dense<0.000000e+00> : vector<16xf32>
      %26 = vector.multi_reduction <add>, %25, %cst_18 [1] : vector<16x32xf32> to vector<16xf32>
      %27 = vector.shape_cast %26 : vector<16xf32> to vector<16x1xf32>
      %cst_19 = arith.constant 0.0322580636 : f32
      %28 = vector.broadcast %cst_19 : f32 to vector<16x1xf32>
      %29 = arith.mulf %27, %28 : vector<16x1xf32>
      %30 = math.sqrt %29 : vector<16x1xf32>
      %cst_20 = arith.constant 9.99999997E-7 : f32
      %31 = vector.broadcast %cst_20 : f32 to vector<16x1xf32>
      %32 = arith.addf %30, %31 : vector<16x1xf32>
      %33 = tpu.reciprocal %32 {approx = true} : vector<16x1xf32> -> vector<16x1xf32>
      %c0_21 = arith.constant 0 : index
      %c0_22 = arith.constant 0 : index
      %34 = vector.load %arg6[%c0_21, %c0_22] : memref<1x32xf32, #tpu.memory_space<vmem>>, vector<1x32xf32>
      %35 = vector.broadcast %34 : vector<1x32xf32> to vector<16x32xf32>
      %36 = arith.mulf %35, %24 : vector<16x32xf32>
      %37 = vector.broadcast %33 : vector<16x1xf32> to vector<16x32xf32>
      %38 = arith.mulf %36, %37 : vector<16x32xf32>
      %c0_23 = arith.constant 0 : index
      %c0_24 = arith.constant 0 : index
      %39 = vector.load %arg7[%c0_23, %c0_24] : memref<1x32xf32, #tpu.memory_space<vmem>>, vector<1x32xf32>
      %40 = vector.broadcast %39 : vector<1x32xf32> to vector<16x32xf32>
      %41 = arith.addf %38, %40 : vector<16x32xf32>
      %42 = arith.truncf %41 : vector<16x32xf32> to vector<16x32xbf16>
      %c0_25 = arith.constant 0 : index
      %c0_26 = arith.constant 0 : index
      %43 = vector.load %arg8[%c0_25, %c0_26] : memref<16x32xbf16, #tpu.memory_space<vmem>>, vector<16x32xbf16>
      tpu.vector_store %arg8[%c0_25, %c0_26], %42 {strides = array<i32>} : memref<16x32xbf16, #tpu.memory_space<vmem>>, vector<16x32xbf16>,
    } else {
    }
    return
  }
  func.func @transform_0(%arg0: i32, %arg1: i32) -> (i32, i32) {
    %c0_i32 = arith.constant 0 : i32
    return %arg0, %arg1 : i32, i32
  }
  func.func @transform_1(%arg0: i32, %arg1: i32) -> (i32, i32) {
    %c0_i32 = arith.constant 0 : i32
    %c0_i32_0 = arith.constant 0 : i32
    return %arg1, %c0_i32 : i32, i32
  }
  func.func @transform_2(%arg0: i32, %arg1: i32) -> (i32, i32) {
    %c0_i32 = arith.constant 0 : i32
    %c0_i32_0 = arith.constant 0 : i32
    %c0_i32_1 = arith.constant 0 : i32
    return %c0_i32, %c0_i32_0 : i32, i32
  }
  func.func @transform_3(%arg0: i32, %arg1: i32) -> (i32, i32) {
    %c0_i32 = arith.constant 0 : i32
    %c0_i32_0 = arith.constant 0 : i32
    return %arg0, %c0_i32 : i32, i32
  }
  func.func @transform_4(%arg0: i32, %arg1: i32) -> (i32, i32) {
    %c0_i32 = arith.constant 0 : i32
    %c0_i32_0 = arith.constant 0 : i32
    %c0_i32_1 = arith.constant 0 : i32
    return %c0_i32, %c0_i32_0 : i32, i32
  }
  func.func @transform_5(%arg0: i32, %arg1: i32) -> (i32, i32) {
    %c0_i32 = arith.constant 0 : i32
    %c0_i32_0 = arith.constant 0 : i32
    %c0_i32_1 = arith.constant 0 : i32
    return %c0_i32, %c0_i32_0 : i32, i32
  }
  func.func @transform_6(%arg0: i32, %arg1: i32) -> (i32, i32) {
    %c0_i32 = arith.constant 0 : i32
    %c0_i32_0 = arith.constant 0 : i32
    return %arg0, %c0_i32 : i32, i32
  }
}

</mosaic_0001>

<llo_original>
// kernel: transformer_decoder.21
$region0: #{transformer_decoder.21}
  #allocation0 [shape = 'u32[]', space=smem, size = 0x4, offset = 0x4, fixed_abs, tag = 'smem constant byte address 0x4 - core index']
  #allocation1 [shape = 'u32[144,128]{1,0:T(1,128)}', space=vmem, size = 0x12000, scoped, tag = 'internal scratch']
  #allocation2 [shape = 'f32[16,32]{1,0:T(8,128)}', space=vmem, size = 0x2000, scoped, tag = 'scratch operand']
  %s0 = inlined_call_operand.vmem [shape: bf16[16,32], index: 0, kind: input, shape index: {}]
  %s1 = inlined_call_operand.vmem [shape: bf16[32,32], index: 1, kind: input, shape index: {}]
  %s2 = inlined_call_operand.vmem [shape: f32[1,32], index: 2, kind: input, shape index: {}]
  %s3 = inlined_call_operand.vmem [shape: bf16[16,32], index: 3, kind: output, shape index: {}]
  %s4 = sld [smem:[#allocation0]]
  $region30: #{transformer_decoder.21} parent=0
    _
  %s6 = ssub.s32 1, %s4
  %s7 = scalar_select 0, %s6, %s4
  // Predicated region
  $region2: #{transformer_decoder.21} parent=0 // pred_check
    _
  $region3: #{transformer_decoder.21} parent=0 // pred_check_branch
    %9 = sbr.rel (0) target = $region5
  $region4: #{transformer_decoder.21} parent=0 // pred_region
    _
  $region5: #{transformer_decoder.21} parent=0 // pred_fallthru
    _
  // Predicated region
  $region6: #{transformer_decoder.21} parent=0 // pred_check
    _
  $region7: #{transformer_decoder.21} parent=0 // pred_check_branch
    %11 = sbr.rel (0) target = $region9
  $region8: #{transformer_decoder.21} parent=0 // pred_region
    _
  $region9: #{transformer_decoder.21} parent=0 // pred_fallthru
    _
  // Predicated region
  $region10: #{transformer_decoder.21} parent=0 // pred_check
    _
  $region11: #{transformer_decoder.21} parent=0 // pred_check_branch
    %13 = sbr.rel (0) target = $region13
  $region12: #{transformer_decoder.21} parent=0 // pred_region
    _
  $region13: #{transformer_decoder.21} parent=0 // pred_fallthru
    _
  %p15 = scmp.eq.s32.totalorder 0, 0
  // Predicated region
  $region14: #{transformer_decoder.21} parent=0 // pred_check
    %p16 = pneg %p15
  $region15: #{transformer_decoder.21} parent=0 // pred_check_branch
    %18 = sbr.rel (%p16) target = $region17
  $region16: #{transformer_decoder.21} parent=0 // pred_region
    %vm19 = vcmask 261120
    %20 = vst.msk [vmem:[#allocation2] sm:$0xff] %vm19, 0.0
    %21 = vst.msk [vmem:[#allocation2 + $0x8] sm:$0xff] %vm19, 0.0
  $region17: #{transformer_decoder.21} parent=0 // pred_fallthru
    _
  %v22 = vld [vmem:[#allocation2] sm:$0xff]
  %v23 = vld [vmem:[#allocation2 + $0x8] sm:$0xff]
  %v24 = vld [vmem:[%s0] sm:$0xf]
  %v25 = vld [vmem:[%s0 + $0x4] sm:$0xf]
  %v26 = vld [vmem:[%s1] sm:$0xf]
  %v27 = vld [vmem:[%s1 + $0x4] sm:$0xf]
  %v28 = vld [vmem:[%s1 + $0x8] sm:$0xf]
  %v29 = vld [vmem:[%s1 + $0xc] sm:$0xf]
  %v32 = vunpack.c.l.b16 %v24
  %v33 = vunpack.c.l.b16 %v25
  %v34 = vpack.c.b16 %v33, %v32
  %v39 = vunpack.c.l.b16 %v26
  %v40 = vunpack.c.l.b16 %v27
  %v41 = vunpack.c.l.b16 %v28
  %v42 = vunpack.c.l.b16 %v29
  %v43 = vpack.c.b16 %v40, %v39
  %v44 = vpack.c.b16 %v42, %v41
  %vm47 = vcmask 261120
  %v49 = vsel %vm47, %v34, 0
  %51 = vmatprep.subr.bf16.mxu0 0
  %52 = vmatpush1.bf16.msra.mxu0 0
  %53 = vmatprep.subr.bf16.mxu0 0
  %54 = vmatpush1.bf16.msra.mxu0 0
  %55 = vmatprep.subr.bf16.mxu0 0
  %56 = vmatpush1.bf16.msra.mxu0 0
  %57 = vmatprep.subr.bf16.mxu0 0
  %58 = vmatpush1.bf16.msra.mxu0 0
  %59 = vmatprep.subr.bf16.mxu0 0
  %60 = vmatpush1.bf16.msra.mxu0 0
  %61 = vmatprep.subr.bf16.mxu0 0
  %62 = vmatpush1.bf16.msra.mxu0 0
  %63 = vmatprep.subr.bf16.mxu0 0
  %64 = vmatpush1.bf16.msra.mxu0 %v44
  %65 = vmatprep.subr.bf16.mxu0 0
  %66 = vmatpush1.bf16.msra.mxu0 %v43
  %67 = vmatprep.subr.bf16.mxu0 0
  %68 = vmatpush2.bf16.msra.mxu0 0
  %69 = vmatprep.subr.bf16.mxu0 0
  %70 = vmatpush2.bf16.msra.mxu0 0
  %71 = vmatprep.subr.bf16.mxu0 0
  %72 = vmatpush2.bf16.msra.mxu0 0
  %73 = vmatprep.subr.bf16.mxu0 0
  %74 = vmatpush2.bf16.msra.mxu0 0
  %75 = vmatprep.subr.bf16.mxu0 0
  %76 = vmatpush2.bf16.msra.mxu0 0
  %77 = vmatprep.subr.bf16.mxu0 0
  %78 = vmatpush2.bf16.msra.mxu0 0
  %79 = vmatprep.subr.bf16.mxu0 0
  %80 = vmatpush2.bf16.msra.mxu0 0
  %81 = vmatprep.subr.bf16.mxu0 0
  %82 = vmatpush2.bf16.msra.mxu0 0
  %83 = vmatprep.mubr.bf16.mxu0 0
  %84 = vmatmul.mubr.bf16.gmra.mxu0 %v49
  %v85 = vpop.f32.mrf.mxu0
  %v86 = vadd.f32 0.0, %v85
  %v87 = vpop.f32.mrf.mxu0
  %v88 = vpop.f32.mrf.mxu0
  %v89 = vadd.f32 0.0, %v88
  %v90 = vpop.f32.mrf.mxu0
  %91 = vdwg.mxu0
  %v92 = vadd.f32 %v22, %v86
  %v93 = vadd.f32 %v23, %v89
  %94 = vst.msk [vmem:[#allocation2] sm:$0xff] %vm47, %v92
  %95 = vst.msk [vmem:[#allocation2 + $0x8] sm:$0xff] %vm47, %v93
  // Predicated region
  $region18: #{transformer_decoder.21} parent=0 // pred_check
    %p96 = pneg %p15
  $region19: #{transformer_decoder.21} parent=0 // pred_check_branch
    %98 = sbr.rel (%p96) target = $region21
  $region20: #{transformer_decoder.21} parent=0 // pred_region
    %v99 = vld [vmem:[#allocation2] sm:$0xff]
    %v100 = vld [vmem:[#allocation2 + $0x8] sm:$0xff]
    %v101 = vld [vmem:[%s2] sm:$0x1]
    %v103 = vlaneseq
    %v104 = vshrl.u32 %v103, 7
    %v105 = vsub.s32 0, %v104
    %v106 = vrot.slane %v101, %v105
    %v108 = vadd.f32 %v99, %v106
    %v109 = vadd.f32 %v100, %v106
    %v110 = vpack.c.bf16 %v109, %v108
    %v112 = vunpack.c.l.b16 %v110
    %v113 = vunpack.c.h.b16 %v110
    %v114 = vpack.c.b16 %v112, %v112
    %v115 = vpack.c.b16 %v113, %v113
    %vm118 = vcmask 257024
    %119 = vst.msk [vmem:[%s3] sm:$0xf] %vm118, %v114
    %120 = vst.msk [vmem:[%s3 + $0x4] sm:$0xf] %vm118, %v115
  $region21: #{transformer_decoder.21} parent=0 // pred_fallthru
    _
  // Predicated region
  $region22: #{transformer_decoder.21} parent=0 // pred_check
    _
  $region23: #{transformer_decoder.21} parent=0 // pred_check_branch
    %122 = sbr.rel (0) target = $region25
  $region24: #{transformer_decoder.21} parent=0 // pred_region
    _
  $region25: #{transformer_decoder.21} parent=0 // pred_fallthru
    _
  // Predicated region
  $region26: #{transformer_decoder.21} parent=0 // pred_check
    _
  $region27: #{transformer_decoder.21} parent=0 // pred_check_branch
    %124 = sbr.rel (0) target = $region29
  $region28: #{transformer_decoder.21} parent=0 // pred_region
    _
  $region29: #{transformer_decoder.21} parent=0 // pred_fallthru
    _

// kernel: transformer_decoder.24
$region0: #{transformer_decoder.24}
  #allocation0 [shape = 'u32[]', space=smem, size = 0x4, offset = 0x4, fixed_abs, tag = 'smem constant byte address 0x4 - core index']
  #allocation1 [shape = 'u32[144,128]{1,0:T(1,128)}', space=vmem, size = 0x12000, scoped, tag = 'internal scratch']
  #allocation2 [shape = 'f32[16,32]{1,0:T(8,128)}', space=vmem, size = 0x2000, scoped, tag = 'scratch operand']
  %s0 = inlined_call_operand.vmem [shape: bf16[16,32], index: 0, kind: input, shape index: {}]
  %s1 = inlined_call_operand.vmem [shape: bf16[32,32], index: 1, kind: input, shape index: {}]
  %s2 = inlined_call_operand.vmem [shape: f32[1,32], index: 2, kind: input, shape index: {}]
  %s3 = inlined_call_operand.vmem [shape: bf16[16,32], index: 3, kind: input, shape index: {}]
  %s4 = inlined_call_operand.vmem [shape: f32[1,32], index: 4, kind: input, shape index: {}]
  %s5 = inlined_call_operand.vmem [shape: f32[1,32], index: 5, kind: input, shape index: {}]
  %s6 = inlined_call_operand.vmem [shape: bf16[16,32], index: 6, kind: output, shape index: {}]
  %s7 = sld [smem:[#allocation0]]
  $region42: #{transformer_decoder.24} parent=0
    _
  %s9 = ssub.s32 1, %s7
  %s10 = scalar_select 0, %s9, %s7
  // Predicated region
  $region2: #{transformer_decoder.24} parent=0 // pred_check
    _
  $region3: #{transformer_decoder.24} parent=0 // pred_check_branch
    %12 = sbr.rel (0) target = $region5
  $region4: #{transformer_decoder.24} parent=0 // pred_region
    _
  $region5: #{transformer_decoder.24} parent=0 // pred_fallthru
    _
  // Predicated region
  $region6: #{transformer_decoder.24} parent=0 // pred_check
    _
  $region7: #{transformer_decoder.24} parent=0 // pred_check_branch
    %14 = sbr.rel (0) target = $region9
  $region8: #{transformer_decoder.24} parent=0 // pred_region
    _
  $region9: #{transformer_decoder.24} parent=0 // pred_fallthru
    _
  // Predicated region
  $region10: #{transformer_decoder.24} parent=0 // pred_check
    _
  $region11: #{transformer_decoder.24} parent=0 // pred_check_branch
    %16 = sbr.rel (0) target = $region13
  $region12: #{transformer_decoder.24} parent=0 // pred_region
    _
  $region13: #{transformer_decoder.24} parent=0 // pred_fallthru
    _
  // Predicated region
  $region14: #{transformer_decoder.24} parent=0 // pred_check
    _
  $region15: #{transformer_decoder.24} parent=0 // pred_check_branch
    %18 = sbr.rel (0) target = $region17
  $region16: #{transformer_decoder.24} parent=0 // pred_region
    _
  $region17: #{transformer_decoder.24} parent=0 // pred_fallthru
    _
  // Predicated region
  $region18: #{transformer_decoder.24} parent=0 // pred_check
    _
  $region19: #{transformer_decoder.24} parent=0 // pred_check_branch
    %20 = sbr.rel (0) target = $region21
  $region20: #{transformer_decoder.24} parent=0 // pred_region
    _
  $region21: #{transformer_decoder.24} parent=0 // pred_fallthru
    _
  // Predicated region
  $region22: #{transformer_decoder.24} parent=0 // pred_check
    _
  $region23: #{transformer_decoder.24} parent=0 // pred_check_branch
    %22 = sbr.rel (0) target = $region25
  $region24: #{transformer_decoder.24} parent=0 // pred_region
    _
  $region25: #{transformer_decoder.24} parent=0 // pred_fallthru
    _
  %p24 = scmp.eq.s32.totalorder 0, 0
  // Predicated region
  $region26: #{transformer_decoder.24} parent=0 // pred_check
    %p25 = pneg %p24
  $region27: #{transformer_decoder.24} parent=0 // pred_check_branch
    %27 = sbr.rel (%p25) target = $region29
  $region28: #{transformer_decoder.24} parent=0 // pred_region
    %vm28 = vcmask 261120
    %29 = vst.msk [vmem:[#allocation2] sm:$0xff] %vm28, 0.0
    %30 = vst.msk [vmem:[#allocation2 + $0x8] sm:$0xff] %vm28, 0.0
  $region29: #{transformer_decoder.24} parent=0 // pred_fallthru
    _
  %v31 = vld [vmem:[#allocation2] sm:$0xff]
  %v32 = vld [vmem:[#allocation2 + $0x8] sm:$0xff]
  %v33 = vld [vmem:[%s0] sm:$0xf]
  %v34 = vld [vmem:[%s0 + $0x4] sm:$0xf]
  %v35 = vld [vmem:[%s1] sm:$0xf]
  %v36 = vld [vmem:[%s1 + $0x4] sm:$0xf]
  %v37 = vld [vmem:[%s1 + $0x8] sm:$0xf]
  %v38 = vld [vmem:[%s1 + $0xc] sm:$0xf]
  %v41 = vunpack.c.l.b16 %v33
  %v42 = vunpack.c.l.b16 %v34
  %v43 = vpack.c.b16 %v42, %v41
  %v48 = vunpack.c.l.b16 %v35
  %v49 = vunpack.c.l.b16 %v36
  %v50 = vunpack.c.l.b16 %v37
  %v51 = vunpack.c.l.b16 %v38
  %v52 = vpack.c.b16 %v49, %v48
  %v53 = vpack.c.b16 %v51, %v50
  %vm56 = vcmask 261120
  %v58 = vsel %vm56, %v43, 0
  %60 = vmatprep.subr.bf16.mxu0 0
  %61 = vmatpush1.bf16.msra.mxu0 0
  %62 = vmatprep.subr.bf16.mxu0 0
  %63 = vmatpush1.bf16.msra.mxu0 0
  %64 = vmatprep.subr.bf16.mxu0 0
  %65 = vmatpush1.bf16.msra.mxu0 0
  %66 = vmatprep.subr.bf16.mxu0 0
  %67 = vmatpush1.bf16.msra.mxu0 0
  %68 = vmatprep.subr.bf16.mxu0 0
  %69 = vmatpush1.bf16.msra.mxu0 0
  %70 = vmatprep.subr.bf16.mxu0 0
  %71 = vmatpush1.bf16.msra.mxu0 0
  %72 = vmatprep.subr.bf16.mxu0 0
  %73 = vmatpush1.bf16.msra.mxu0 %v53
  %74 = vmatprep.subr.bf16.mxu0 0
  %75 = vmatpush1.bf16.msra.mxu0 %v52
  %76 = vmatprep.subr.bf16.mxu0 0
  %77 = vmatpush2.bf16.msra.mxu0 0
  %78 = vmatprep.subr.bf16.mxu0 0
  %79 = vmatpush2.bf16.msra.mxu0 0
  %80 = vmatprep.subr.bf16.mxu0 0
  %81 = vmatpush2.bf16.msra.mxu0 0
  %82 = vmatprep.subr.bf16.mxu0 0
  %83 = vmatpush2.bf16.msra.mxu0 0
  %84 = vmatprep.subr.bf16.mxu0 0
  %85 = vmatpush2.bf16.msra.mxu0 0
  %86 = vmatprep.subr.bf16.mxu0 0
  %87 = vmatpush2.bf16.msra.mxu0 0
  %88 = vmatprep.subr.bf16.mxu0 0
  %89 = vmatpush2.bf16.msra.mxu0 0
  %90 = vmatprep.subr.bf16.mxu0 0
  %91 = vmatpush2.bf16.msra.mxu0 0
  %92 = vmatprep.mubr.bf16.mxu0 0
  %93 = vmatmul.mubr.bf16.gmra.mxu0 %v58
  %v94 = vpop.f32.mrf.mxu0
  %v95 = vadd.f32 0.0, %v94
  %v96 = vpop.f32.mrf.mxu0
  %v97 = vpop.f32.mrf.mxu0
  %v98 = vadd.f32 0.0, %v97
  %v99 = vpop.f32.mrf.mxu0
  %100 = vdwg.mxu0
  %v101 = vadd.f32 %v31, %v95
  %v102 = vadd.f32 %v32, %v98
  %103 = vst.msk [vmem:[#allocation2] sm:$0xff] %vm56, %v101
  %104 = vst.msk [vmem:[#allocation2 + $0x8] sm:$0xff] %vm56, %v102
  // Predicated region
  $region30: #{transformer_decoder.24} parent=0 // pred_check
    %p105 = pneg %p24
  $region31: #{transformer_decoder.24} parent=0 // pred_check_branch
    %107 = sbr.rel (%p105) target = $region33
  $region32: #{transformer_decoder.24} parent=0 // pred_region
    %v108 = vld [vmem:[#allocation2] sm:$0xff]
    %v109 = vld [vmem:[#allocation2 + $0x8] sm:$0xff]
    %v110 = vld [vmem:[%s2] sm:$0x1]
    %v112 = vlaneseq
    %v113 = vshrl.u32 %v112, 7
    %v114 = vsub.s32 0, %v113
    %v115 = vrot.slane %v110, %v114
    %v117 = vadd.f32 %v108, %v115
    %v118 = vadd.f32 %v109, %v115
    %v119 = vld [vmem:[%s3] sm:$0xf]
    %v120 = vld [vmem:[%s3 + $0x4] sm:$0xf]
    %v121 = vunpack.c.l.bf16 %v119
    %v122 = vunpack.c.l.bf16 %v120
    %v123 = vadd.f32 %v117, %v121
    %v124 = vadd.f32 %v118, %v122
    %v125 = vsel %vm56, %v123, 0.0
    %126 = vadd.xlane.f32.xlu0 %v125
    %v127 = vpop.xlane.xlu0 %126
    %v128 = vsel %vm56, %v124, 0.0
    %129 = vadd.xlane.f32.xlu0 %v128
    %v130 = vpop.xlane.xlu0 %129
    %v131 = vrcp.pop 32.0
    %v132 = vmul.f32 %v127, %v131
    %v133 = vmul.f32 %v130, %v131
    %v134 = vsub.f32 %v123, %v132
    %v135 = vsub.f32 %v124, %v133
    %v136 = vmul.f32 %v134, %v134
    %v137 = vmul.f32 %v135, %v135
    %v138 = vsel %vm56, %v136, 0.0
    %139 = vadd.xlane.f32.xlu0 %v138
    %v140 = vpop.xlane.xlu0 %139
    %v141 = vsel %vm56, %v137, 0.0
    %142 = vadd.xlane.f32.xlu0 %v141
    %v143 = vpop.xlane.xlu0 %142
    %v144 = vmul.f32 %v140, 0.032258064
    %v145 = vmul.f32 %v143, 0.032258064
    %v146 = vrsqrt.pop %v144
    %v147 = vmul.f32 %v144, %v146
    %vm148 = vcmp.eq.f32.partialorder %v144, inf
    %v149 = vsel %vm148, %v144, %v147
    %vm150 = vcmp.eq.f32.partialorder %v144, 0.0
    %v151 = vand.u32 %v144, 2147483648
    %v152 = vsel %vm150, %v151, %v149
    %v153 = vrsqrt.pop %v145
    %v154 = vmul.f32 %v145, %v153
    %vm155 = vcmp.eq.f32.partialorder %v145, inf
    %v156 = vsel %vm155, %v145, %v154
    %vm157 = vcmp.eq.f32.partialorder %v145, 0.0
    %v158 = vand.u32 %v145, 2147483648
    %v159 = vsel %vm157, %v158, %v156
    %v160 = vadd.f32 %v152, 1e-06
    %v161 = vadd.f32 %v159, 1e-06
    %v162 = vrcp.pop %v160
    %v163 = vrcp.pop %v161
    %v164 = vld [vmem:[%s4] sm:$0x1]
    %v166 = vlaneseq
    %v167 = vshrl.u32 %v166, 7
    %v168 = vsub.s32 0, %v167
    %v169 = vrot.slane %v164, %v168
    %v171 = vmul.f32 %v169, %v134
    %v172 = vmul.f32 %v169, %v135
    %v173 = vmul.f32 %v171, %v162
    %v174 = vmul.f32 %v172, %v163
    %v175 = vld [vmem:[%s5] sm:$0x1]
    %v177 = vlaneseq
    %v178 = vshrl.u32 %v177, 7
    %v179 = vsub.s32 0, %v178
    %v180 = vrot.slane %v175, %v179
    %v182 = vadd.f32 %v173, %v180
    %v183 = vadd.f32 %v174, %v180
    %v184 = vpack.c.bf16 %v183, %v182
    %v186 = vunpack.c.l.b16 %v184
    %v187 = vunpack.c.h.b16 %v184
    %v188 = vpack.c.b16 %v186, %v186
    %v189 = vpack.c.b16 %v187, %v187
    %vm192 = vcmask 257024
    %193 = vst.msk [vmem:[%s6] sm:$0xf] %vm192, %v188
    %194 = vst.msk [vmem:[%s6 + $0x4] sm:$0xf] %vm192, %v189
  $region33: #{transformer_decoder.24} parent=0 // pred_fallthru
    _
  // Predicated region
  $region34: #{transformer_decoder.24} parent=0 // pred_check
    _
  $region35: #{transformer_decoder.24} parent=0 // pred_check_branch
    %196 = sbr.rel (0) target = $region37
  $region36: #{transformer_decoder.24} parent=0 // pred_region
    _
  $region37: #{transformer_decoder.24} parent=0 // pred_fallthru
    _
  // Predicated region
  $region38: #{transformer_decoder.24} parent=0 // pred_check
    _
  $region39: #{transformer_decoder.24} parent=0 // pred_check_branch
    %198 = sbr.rel (0) target = $region41
  $region40: #{transformer_decoder.24} parent=0 // pred_region
    _
  $region41: #{transformer_decoder.24} parent=0 // pred_fallthru
    _

// kernel: transformer_decoder.36
$region0: #{transformer_decoder.36}
  #allocation0 [shape = 'u32[]', space=smem, size = 0x4, offset = 0x4, fixed_abs, tag = 'smem constant byte address 0x4 - core index']
  #allocation1 [shape = 'u32[144,128]{1,0:T(1,128)}', space=vmem, size = 0x12000, scoped, tag = 'internal scratch']
  #allocation2 [shape = 'f32[16,64]{1,0:T(8,128)}', space=vmem, size = 0x2000, scoped, tag = 'scratch operand']
  %s0 = inlined_call_operand.vmem [shape: bf16[16,32], index: 0, kind: input, shape index: {}]
  %s1 = inlined_call_operand.vmem [shape: bf16[32,64], index: 1, kind: input, shape index: {}]
  %s2 = inlined_call_operand.vmem [shape: f32[1,64], index: 2, kind: input, shape index: {}]
  %s3 = inlined_call_operand.vmem [shape: bf16[16,64], index: 3, kind: output, shape index: {}]
  %s4 = sld [smem:[#allocation0]]
  $region30: #{transformer_decoder.36} parent=0
    _
  %s6 = ssub.s32 1, %s4
  %s7 = scalar_select 0, %s6, %s4
  // Predicated region
  $region2: #{transformer_decoder.36} parent=0 // pred_check
    _
  $region3: #{transformer_decoder.36} parent=0 // pred_check_branch
    %9 = sbr.rel (0) target = $region5
  $region4: #{transformer_decoder.36} parent=0 // pred_region
    _
  $region5: #{transformer_decoder.36} parent=0 // pred_fallthru
    _
  // Predicated region
  $region6: #{transformer_decoder.36} parent=0 // pred_check
    _
  $region7: #{transformer_decoder.36} parent=0 // pred_check_branch
    %11 = sbr.rel (0) target = $region9
  $region8: #{transformer_decoder.36} parent=0 // pred_region
    _
  $region9: #{transformer_decoder.36} parent=0 // pred_fallthru
    _
  // Predicated region
  $region10: #{transformer_decoder.36} parent=0 // pred_check
    _
  $region11: #{transformer_decoder.36} parent=0 // pred_check_branch
    %13 = sbr.rel (0) target = $region13
  $region12: #{transformer_decoder.36} parent=0 // pred_region
    _
  $region13: #{transformer_decoder.36} parent=0 // pred_fallthru
    _
  %p15 = scmp.eq.s32.totalorder 0, 0
  // Predicated region
  $region14: #{transformer_decoder.36} parent=0 // pred_check
    %p16 = pneg %p15
  $region15: #{transformer_decoder.36} parent=0 // pred_check_branch
    %18 = sbr.rel (%p16) target = $region17
  $region16: #{transformer_decoder.36} parent=0 // pred_region
    %vm19 = vcmask 523264
    %20 = vst.msk [vmem:[#allocation2] sm:$0xff] %vm19, 0.0
    %21 = vst.msk [vmem:[#allocation2 + $0x8] sm:$0xff] %vm19, 0.0
  $region17: #{transformer_decoder.36} parent=0 // pred_fallthru
    _
  %v22 = vld [vmem:[#allocation2] sm:$0xff]
  %v23 = vld [vmem:[#allocation2 + $0x8] sm:$0xff]
  %v24 = vld [vmem:[%s0] sm:$0xf]
  %v25 = vld [vmem:[%s0 + $0x4] sm:$0xf]
  %v26 = vld [vmem:[%s1] sm:$0xf]
  %v27 = vld [vmem:[%s1 + $0x4] sm:$0xf]
  %v28 = vld [vmem:[%s1 + $0x8] sm:$0xf]
  %v29 = vld [vmem:[%s1 + $0xc] sm:$0xf]
  %v32 = vunpack.c.l.b16 %v24
  %v33 = vunpack.c.l.b16 %v25
  %v34 = vpack.c.b16 %v33, %v32
  %v39 = vunpack.c.l.b16 %v26
  %v40 = vunpack.c.l.b16 %v27
  %v41 = vunpack.c.l.b16 %v28
  %v42 = vunpack.c.l.b16 %v29
  %v43 = vpack.c.b16 %v40, %v39
  %v44 = vpack.c.b16 %v42, %v41
  %vm47 = vcmask 261120
  %v49 = vsel %vm47, %v34, 0
  %51 = vmatprep.subr.bf16.mxu0 0
  %52 = vmatpush1.bf16.msra.mxu0 0
  %53 = vmatprep.subr.bf16.mxu0 0
  %54 = vmatpush1.bf16.msra.mxu0 0
  %55 = vmatprep.subr.bf16.mxu0 0
  %56 = vmatpush1.bf16.msra.mxu0 0
  %57 = vmatprep.subr.bf16.mxu0 0
  %58 = vmatpush1.bf16.msra.mxu0 0
  %59 = vmatprep.subr.bf16.mxu0 0
  %60 = vmatpush1.bf16.msra.mxu0 0
  %61 = vmatprep.subr.bf16.mxu0 0
  %62 = vmatpush1.bf16.msra.mxu0 0
  %63 = vmatprep.subr.bf16.mxu0 0
  %64 = vmatpush1.bf16.msra.mxu0 %v44
  %65 = vmatprep.subr.bf16.mxu0 0
  %66 = vmatpush1.bf16.msra.mxu0 %v43
  %67 = vmatprep.subr.bf16.mxu0 0
  %68 = vmatpush2.bf16.msra.mxu0 0
  %69 = vmatprep.subr.bf16.mxu0 0
  %70 = vmatpush2.bf16.msra.mxu0 0
  %71 = vmatprep.subr.bf16.mxu0 0
  %72 = vmatpush2.bf16.msra.mxu0 0
  %73 = vmatprep.subr.bf16.mxu0 0
  %74 = vmatpush2.bf16.msra.mxu0 0
  %75 = vmatprep.subr.bf16.mxu0 0
  %76 = vmatpush2.bf16.msra.mxu0 0
  %77 = vmatprep.subr.bf16.mxu0 0
  %78 = vmatpush2.bf16.msra.mxu0 0
  %79 = vmatprep.subr.bf16.mxu0 0
  %80 = vmatpush2.bf16.msra.mxu0 0
  %81 = vmatprep.subr.bf16.mxu0 0
  %82 = vmatpush2.bf16.msra.mxu0 0
  %83 = vmatprep.mubr.bf16.mxu0 0
  %84 = vmatmul.mubr.bf16.gmra.mxu0 %v49
  %v85 = vpop.f32.mrf.mxu0
  %v86 = vadd.f32 0.0, %v85
  %v87 = vpop.f32.mrf.mxu0
  %v88 = vpop.f32.mrf.mxu0
  %v89 = vadd.f32 0.0, %v88
  %v90 = vpop.f32.mrf.mxu0
  %91 = vdwg.mxu0
  %v92 = vadd.f32 %v22, %v86
  %v93 = vadd.f32 %v23, %v89
  %vm94 = vcmask 523264
  %95 = vst.msk [vmem:[#allocation2] sm:$0xff] %vm94, %v92
  %96 = vst.msk [vmem:[#allocation2 + $0x8] sm:$0xff] %vm94, %v93
  // Predicated region
  $region18: #{transformer_decoder.36} parent=0 // pred_check
    %p97 = pneg %p15
  $region19: #{transformer_decoder.36} parent=0 // pred_check_branch
    %99 = sbr.rel (%p97) target = $region21
  $region20: #{transformer_decoder.36} parent=0 // pred_region
    %v100 = vld [vmem:[#allocation2] sm:$0xff]
    %v101 = vld [vmem:[#allocation2 + $0x8] sm:$0xff]
    %v102 = vld [vmem:[%s2] sm:$0x1]
    %v104 = vlaneseq
    %v105 = vshrl.u32 %v104, 7
    %v106 = vsub.s32 0, %v105
    %v107 = vrot.slane %v102, %v106
    %v109 = vadd.f32 %v100, %v107
    %v110 = vadd.f32 %v101, %v107
    %v111 = vpack.c.bf16 %v110, %v109
    %v113 = vunpack.c.l.b16 %v111
    %v114 = vunpack.c.h.b16 %v111
    %v115 = vpack.c.b16 %v113, %v113
    %v116 = vpack.c.b16 %v114, %v114
    %vm119 = vcmask 519168
    %120 = vst.msk [vmem:[%s3] sm:$0xf] %vm119, %v115
    %121 = vst.msk [vmem:[%s3 + $0x4] sm:$0xf] %vm119, %v116
  $region21: #{transformer_decoder.36} parent=0 // pred_fallthru
    _
  // Predicated region
  $region22: #{transformer_decoder.36} parent=0 // pred_check
    _
  $region23: #{transformer_decoder.36} parent=0 // pred_check_branch
    %123 = sbr.rel (0) target = $region25
  $region24: #{transformer_decoder.36} parent=0 // pred_region
    _
  $region25: #{transformer_decoder.36} parent=0 // pred_fallthru
    _
  // Predicated region
  $region26: #{transformer_decoder.36} parent=0 // pred_check
    _
  $region27: #{transformer_decoder.36} parent=0 // pred_check_branch
    %125 = sbr.rel (0) target = $region29
  $region28: #{transformer_decoder.36} parent=0 // pred_region
    _
  $region29: #{transformer_decoder.36} parent=0 // pred_fallthru
    _

// kernel: transformer_decoder.23
$region0: #{transformer_decoder.23}
  #allocation0 [shape = 'u32[]', space=smem, size = 0x4, offset = 0x4, fixed_abs, tag = 'smem constant byte address 0x4 - core index']
  #allocation1 [shape = 'u32[144,128]{1,0:T(1,128)}', space=vmem, size = 0x12000, scoped, tag = 'internal scratch']
  %s0 = inlined_call_operand.vmem [shape: bf16[2,8,32], index: 0, kind: input, shape index: {}]
  %s1 = inlined_call_operand.vmem [shape: bf16[2,8,64], index: 1, kind: input, shape index: {}]
  %s2 = inlined_call_operand.vmem [shape: bf16[2,8,8], index: 2, kind: input, shape index: {}]
  %s3 = inlined_call_operand.vmem [shape: bf16[2,8,32], index: 3, kind: output, shape index: {}]
  %s4 = sld [smem:[#allocation0]]
  $region45: #{transformer_decoder.23} parent=0
    _
  %s6 = ssub.s32 1, %s4
  %s7 = scalar_select 0, %s6, %s4
  loop: start=0, step=1, limit=4
  $region2: #{transformer_decoder.23} parent=0 // loop_pre_header
    _
  $region3: #{transformer_decoder.23} parent=0 // loop_header
    %s9 = sphi 0, %s13
    %p10 = scmp.ge.s32.totalorder %s9, 4
    %s16 = sphi 0, %s28
    %s17 = sphi 0, %s24
    %s18 = sphi 0, %s16
    %s19 = sphi 0, %s17
    %s20 = sphi 0, %s18
    %s21 = sphi 0, %s19
    %s33 = sphi 0, %s35
    %s36 = sphi 0, %s33
    %s37 = sphi 0, %s36
    %s53 = sphi 0, %s37
    %s59 = sphi 0, %s61
    %s62 = sphi 0, %s59
    %s63 = sphi 0, %s62
    %s79 = sphi 0, %s63
    %s87 = sphi 0, %s89
    %s90 = sphi 0, %s87
    %s91 = sphi 0, %s90
    %s107 = sphi 0, %s91
    %s115 = sphi 0, %s117
    %s118 = sphi 0, %s115
    %s119 = sphi 0, %s118
    %s135 = sphi 0, %s119
  $region4: #{transformer_decoder.23} parent=0 // loop_header_branch
    %12 = sbr.rel (%p10) target = $region8
  $region5: #{transformer_decoder.23} parent=0 // loop_body
    %s14 = ssub.s32 %s9, 1
    %s15 = ssub.s32 %s9, 2
    %s22 = sadd.s32 1, %s17
    %p23 = scmp.ge.s32.totalorder %s22, 1
    %s24 = scalar_select %p23, 0, %s22
    %s25 = sadd.s32 1, %s16
    %s26 = scalar_select %p23, %s25, %s16
    %p27 = scmp.ge.s32.totalorder %s26, 2
    %s28 = scalar_select %p27, 0, %s26
    %s29 = ssub.s32 %s16, %s28
    %s30 = ssub.s32 %s17, %s24
    %s31 = sor.u32 %s29, %s30
    %p32 = scmp.eq.s32.totalorder %s31, 0
    %s34 = sadd.s32 %s33, 1
    %s35 = scalar_select %p32, %s33, %s34
    %p38 = pneg %p32
    %p39 = scmp.eq.s32.totalorder %s9, 1
    %p40 = por %p38, %p39
    %p41 = scmp.ne.s32.totalorder %s33, %s36
    %p42 = scmp.eq.s32.totalorder %s9, 0
    %p43 = por %p41, %p42
    %p44 = scmp.ne.s32.totalorder %s33, %s36
    %p45 = scmp.eq.s32.totalorder %s14, 1
    %p46 = por %p44, %p45
    %p47 = scmp.ne.s32.totalorder %s36, %s37
    %p48 = scmp.eq.s32.totalorder %s14, 0
    %p49 = por %p47, %p48
    %p50 = scmp.ne.s32.totalorder %s36, %s37
    %p51 = scmp.eq.s32.totalorder %s15, 1
    %p52 = por %p50, %p51
    %p54 = scmp.ne.s32.totalorder %s37, %s53
    %p55 = scmp.eq.s32.totalorder %s15, 0
    %p56 = por %p54, %p55
    %s57 = ssub.s32 %s16, %s28
    %p58 = scmp.eq.s32.totalorder %s57, 0
    %s60 = sadd.s32 %s59, 1
    %s61 = scalar_select %p58, %s59, %s60
    %p64 = pneg %p58
    %p65 = scmp.eq.s32.totalorder %s9, 1
    %p66 = por %p64, %p65
    %p67 = scmp.ne.s32.totalorder %s59, %s62
    %p68 = scmp.eq.s32.totalorder %s9, 0
    %p69 = por %p67, %p68
    %p70 = scmp.ne.s32.totalorder %s59, %s62
    %p71 = scmp.eq.s32.totalorder %s14, 1
    %p72 = por %p70, %p71
    %p73 = scmp.ne.s32.totalorder %s62, %s63
    %p74 = scmp.eq.s32.totalorder %s14, 0
    %p75 = por %p73, %p74
    %p76 = scmp.ne.s32.totalorder %s62, %s63
    %p77 = scmp.eq.s32.totalorder %s15, 1
    %p78 = por %p76, %p77
    %p80 = scmp.ne.s32.totalorder %s63, %s79
    %p81 = scmp.eq.s32.totalorder %s15, 0
    %p82 = por %p80, %p81
    %s83 = ssub.s32 %s16, %s28
    %s84 = ssub.s32 %s17, %s24
    %s85 = sor.u32 %s83, %s84
    %p86 = scmp.eq.s32.totalorder %s85, 0
    %s88 = sadd.s32 %s87, 1
    %s89 = scalar_select %p86, %s87, %s88
    %p92 = pneg %p86
    %p93 = scmp.eq.s32.totalorder %s9, 1
    %p94 = por %p92, %p93
    %p95 = scmp.ne.s32.totalorder %s87, %s90
    %p96 = scmp.eq.s32.totalorder %s9, 0
    %p97 = por %p95, %p96
    %p98 = scmp.ne.s32.totalorder %s87, %s90
    %p99 = scmp.eq.s32.totalorder %s14, 1
    %p100 = por %p98, %p99
    %p101 = scmp.ne.s32.totalorder %s90, %s91
    %p102 = scmp.eq.s32.totalorder %s14, 0
    %p103 = por %p101, %p102
    %p104 = scmp.ne.s32.totalorder %s90, %s91
    %p105 = scmp.eq.s32.totalorder %s15, 1
    %p106 = por %p104, %p105
    %p108 = scmp.ne.s32.totalorder %s91, %s107
    %p109 = scmp.eq.s32.totalorder %s15, 0
    %p110 = por %p108, %p109
    %s111 = ssub.s32 %s16, %s28
    %s112 = ssub.s32 %s17, %s24
    %s113 = sor.u32 %s111, %s112
    %p114 = scmp.eq.s32.totalorder %s113, 0
    %s116 = sadd.s32 %s115, 1
    %s117 = scalar_select %p114, %s115, %s116
    %p120 = pneg %p114
    %p121 = scmp.eq.s32.totalorder %s9, 1
    %p122 = por %p120, %p121
    %p123 = scmp.ne.s32.totalorder %s115, %s118
    %p124 = scmp.eq.s32.totalorder %s9, 0
    %p125 = por %p123, %p124
    %p126 = scmp.ne.s32.totalorder %s115, %s118
    %p127 = scmp.eq.s32.totalorder %s14, 1
    %p128 = por %p126, %p127
    %p129 = scmp.ne.s32.totalorder %s118, %s119
    %p130 = scmp.eq.s32.totalorder %s14, 0
    %p131 = por %p129, %p130
    %p132 = scmp.ne.s32.totalorder %s118, %s119
    %p133 = scmp.eq.s32.totalorder %s15, 1
    %p134 = por %p132, %p133
    %p136 = scmp.ne.s32.totalorder %s119, %s135
    %p137 = scmp.eq.s32.totalorder %s15, 0
    %p138 = por %p136, %p137
    %p139 = scmp.le.s32.totalorder 1, %s9
    %p140 = scmp.lt.s32.totalorder %s9, 3
    %p141 = pnand %p139, %p140
    %p142 = pneg %p141
    // Predicated region
    $region9: #{transformer_decoder.23} parent=5 // pred_check
      _
    $region10: #{transformer_decoder.23} parent=5 // pred_check_branch
      %144 = sbr.rel (%p141) target = $region12
    $region11: #{transformer_decoder.23} parent=5 // pred_region
      %s145 = ssub.s32 %s9, 1
    $region12: #{transformer_decoder.23} parent=5 // pred_fallthru
      _
    %p146 = scmp.lt.s32.totalorder %s9, 2
    // Predicated region
    $region13: #{transformer_decoder.23} parent=5 // pred_check
      %p147 = pneg %p146
    $region14: #{transformer_decoder.23} parent=5 // pred_check_branch
      %149 = sbr.rel (%p147) target = $region16
    $region15: #{transformer_decoder.23} parent=5 // pred_region
      // Predicated region
      $region17: #{transformer_decoder.23} parent=15 // pred_check
        %p150 = pneg %p43
      $region18: #{transformer_decoder.23} parent=15 // pred_check_branch
        %152 = sbr.rel (%p150) target = $region20
      $region19: #{transformer_decoder.23} parent=15 // pred_region
        %p153 = scmp.lt.s32.totalorder %s16, 1
        %s154 = scalar_select %p153, %s16, 1
        %p155 = scmp.lt.s32.totalorder %s17, 0
        %s156 = scalar_select %p155, %s17, 0
        %s157 = sadd.s32 %s156, %s154
        %s158 = smul.addr %s157, 4
        %s159 = scalar_lea.vmem %s0, %s158
      $region20: #{transformer_decoder.23} parent=15 // pred_fallthru
        _
      // Predicated region
      $region21: #{transformer_decoder.23} parent=15 // pred_check
        %p160 = pneg %p69
      $region22: #{transformer_decoder.23} parent=15 // pred_check_branch
        %162 = sbr.rel (%p160) target = $region24
      $region23: #{transformer_decoder.23} parent=15 // pred_region
        %p163 = scmp.lt.s32.totalorder %s16, 1
        %s164 = scalar_select %p163, %s16, 1
        %s165 = smul.addr %s164, 4
        %s166 = scalar_lea.vmem %s1, %s165
      $region24: #{transformer_decoder.23} parent=15 // pred_fallthru
        _
      // Predicated region
      $region25: #{transformer_decoder.23} parent=15 // pred_check
        %p167 = pneg %p97
      $region26: #{transformer_decoder.23} parent=15 // pred_check_branch
        %169 = sbr.rel (%p167) target = $region28
      $region27: #{transformer_decoder.23} parent=15 // pred_region
        %p170 = scmp.lt.s32.totalorder %s16, 1
        %s171 = scalar_select %p170, %s16, 1
        %p172 = scmp.lt.s32.totalorder %s17, 0
        %s173 = scalar_select %p172, %s17, 0
        %s174 = sadd.s32 %s173, %s171
        %s175 = smul.addr %s174, 4
        %s176 = scalar_lea.vmem %s2, %s175
      $region28: #{transformer_decoder.23} parent=15 // pred_fallthru
        _
    $region16: #{transformer_decoder.23} parent=5 // pred_fallthru
      _
    %p177 = scmp.le.s32.totalorder 1, %s9
    %p178 = scmp.lt.s32.totalorder %s9, 3
    %p179 = pnand %p177, %p178
    %p180 = pneg %p179
    // Predicated region
    $region29: #{transformer_decoder.23} parent=5 // pred_check
      _
    $region30: #{transformer_decoder.23} parent=5 // pred_check_branch
      %182 = sbr.rel (%p179) target = $region32
    $region31: #{transformer_decoder.23} parent=5 // pred_region
      %s183 = ssub.s32 %s9, 1
      %p184 = scmp.lt.s32.totalorder %s18, 1
      %s185 = scalar_select %p184, %s18, 1
      %p186 = scmp.lt.s32.totalorder %s19, 0
      %s187 = scalar_select %p186, %s19, 0
      %s188 = sadd.s32 %s187, %s185
      %s189 = smul.addr %s188, 4
      %s190 = scalar_lea.vmem %s0, %s189
      %p191 = pneg %p49
      %p192 = pneg %p46
      %p193 = scmp.lt.s32.totalorder %s18, 1
      %s194 = scalar_select %p193, %s18, 1
      %s195 = smul.addr %s194, 4
      %s196 = scalar_lea.vmem %s1, %s195
      %p197 = pneg %p75
      %p198 = pneg %p72
      %p199 = scmp.lt.s32.totalorder %s18, 1
      %s200 = scalar_select %p199, %s18, 1
      %p201 = scmp.lt.s32.totalorder %s19, 0
      %s202 = scalar_select %p201, %s19, 0
      %s203 = sadd.s32 %s202, %s200
      %s204 = smul.addr %s203, 4
      %s205 = scalar_lea.vmem %s2, %s204
      %p206 = pneg %p103
      %p207 = pneg %p100
      %p208 = pneg %p131
      %p209 = pneg %p128
      %p210 = scmp.lt.s32.totalorder %s18, 1
      %s211 = scalar_select %p210, %s18, 1
      %p212 = scmp.lt.s32.totalorder %s19, 0
      %s213 = scalar_select %p212, %s19, 0
      %s214 = sadd.s32 %s213, %s211
      %s215 = smul.addr %s214, 4
      %s216 = scalar_lea.vmem %s3, %s215
      %p217 = scmp.lt.s32.totalorder %s18, 1
      %s218 = scalar_select %p217, %s18, 1
      %p219 = scmp.lt.s32.totalorder %s19, 0
      %s220 = scalar_select %p219, %s19, 0
      %s221 = sadd.s32 %s220, %s218
      %s222 = smul.addr %s221, 4
      %s223 = scalar_lea.vmem %s0, %s222
      %p224 = scmp.lt.s32.totalorder %s18, 1
      %s225 = scalar_select %p224, %s18, 1
      %s226 = smul.addr %s225, 4
      %s227 = scalar_lea.vmem %s1, %s226
      %p228 = scmp.lt.s32.totalorder %s18, 1
      %s229 = scalar_select %p228, %s18, 1
      %p230 = scmp.lt.s32.totalorder %s19, 0
      %s231 = scalar_select %p230, %s19, 0
      %s232 = sadd.s32 %s231, %s229
      %s233 = smul.addr %s232, 4
      %s234 = scalar_lea.vmem %s2, %s233
      %p235 = scmp.lt.s32.totalorder %s18, 1
      %s236 = scalar_select %p235, %s18, 1
      %p237 = scmp.lt.s32.totalorder %s19, 0
      %s238 = scalar_select %p237, %s19, 0
      %s239 = sadd.s32 %s238, %s236
      %s240 = smul.addr %s239, 4
      %s241 = scalar_lea.vmem %s3, %s240
      %v244 = vld [vmem:[%s234] sm:$0xf]
      %v245 = vunpack.c.l.bf16 %v244
      %v246 = vld [vmem:[%s223] sm:$0xf]
      %v247 = vmul.bf16 %v246, 1052065461
      %v248 = vld [vmem:[%s227] sm:$0xf]
      %vm249 = vcmask 64512
      %v251 = vsel %vm249, %v247, 0
      %v254 = vsel %vm249, %v248, 0
      %256 = vmatprep.subr.bf16.mxu0 0
      %257 = vmatpush1.bf16.xpose.msra.mxu0 0
      %258 = vmatprep.subr.bf16.mxu0 0
      %259 = vmatpush1.bf16.xpose.msra.mxu0 0
      %260 = vmatprep.subr.bf16.mxu0 0
      %261 = vmatpush1.bf16.xpose.msra.mxu0 0
      %262 = vmatprep.subr.bf16.mxu0 0
      %263 = vmatpush1.bf16.xpose.msra.mxu0 0
      %264 = vmatprep.subr.bf16.mxu0 0
      %265 = vmatpush1.bf16.xpose.msra.mxu0 0
      %266 = vmatprep.subr.bf16.mxu0 0
      %267 = vmatpush1.bf16.xpose.msra.mxu0 0
      %268 = vmatprep.subr.bf16.mxu0 0
      %269 = vmatpush1.bf16.xpose.msra.mxu0 0
      %270 = vmatprep.subr.bf16.mxu0 0
      %271 = vmatpush1.bf16.xpose.msra.mxu0 %v254
      %272 = vmatprep.subr.bf16.mxu0 0
      %273 = vmatpush2.bf16.xpose.msra.mxu0 0
      %274 = vmatprep.subr.bf16.mxu0 0
      %275 = vmatpush2.bf16.xpose.msra.mxu0 0
      %276 = vmatprep.subr.bf16.mxu0 0
      %277 = vmatpush2.bf16.xpose.msra.mxu0 0
      %278 = vmatprep.subr.bf16.mxu0 0
      %279 = vmatpush2.bf16.xpose.msra.mxu0 0
      %280 = vmatprep.subr.bf16.mxu0 0
      %281 = vmatpush2.bf16.xpose.msra.mxu0 0
      %282 = vmatprep.subr.bf16.mxu0 0
      %283 = vmatpush2.bf16.xpose.msra.mxu0 0
      %284 = vmatprep.subr.bf16.mxu0 0
      %285 = vmatpush2.bf16.xpose.msra.mxu0 0
      %286 = vmatprep.subr.bf16.mxu0 0
      %287 = vmatpush2.bf16.xpose.msra.mxu0 0
      %288 = vmatprep.mubr.bf16.mxu0 0
      %289 = vmatmul.mubr.bf16.gmra.mxu0 %v251
      %v290 = vpop.f32.mrf.mxu0
      %v291 = vadd.f32 %v245, %v290
      %v292 = vpop.f32.mrf.mxu0
      %v293 = vpop.f32.mrf.mxu0
      %v294 = vpop.f32.mrf.mxu0
      %295 = vdwg.mxu0
      %v296 = vsel %vm249, %v291, -inf
      %297 = vmax.xlane.f32.xlu0 %v296
      %v298 = vpop.xlane.xlu0 %297
      %v299 = vsub.f32 %v291, %v298
      %v300 = vmul.f32 %v299, 1.442695
      %v301 = vpow.pop %v300
      %v302 = vsel %vm249, %v301, 0.0
      %303 = vadd.xlane.f32.xlu0 %v302
      %v304 = vpop.xlane.xlu0 %303
      %v305 = vrcp.pop %v304
      %v306 = vmul.f32 %v301, %v305
      %v307 = vpack.c.bf16 %v306, %v306
      %v309 = vunpack.c.l.b16 %v248
      %v310 = vpack.c.b16 %v309, %v309
      %311 = vrot.lane.b32.xlu0 %v310, 96
      %v312 = vpop.permute.xlu0 %311
      %v314 = vsel %vm249, %v307, 0
      %vm316 = vcmask 1043456
      %v318 = vsel %vm316, %v312, 0
      %320 = vmatprep.subr.bf16.mxu0 0
      %321 = vmatpush1.bf16.msra.mxu0 0
      %322 = vmatprep.subr.bf16.mxu0 0
      %323 = vmatpush1.bf16.msra.mxu0 0
      %324 = vmatprep.subr.bf16.mxu0 0
      %325 = vmatpush1.bf16.msra.mxu0 0
      %326 = vmatprep.subr.bf16.mxu0 0
      %327 = vmatpush1.bf16.msra.mxu0 0
      %328 = vmatprep.subr.bf16.mxu0 0
      %329 = vmatpush1.bf16.msra.mxu0 0
      %330 = vmatprep.subr.bf16.mxu0 0
      %331 = vmatpush1.bf16.msra.mxu0 0
      %332 = vmatprep.subr.bf16.mxu0 0
      %333 = vmatpush1.bf16.msra.mxu0 0
      %334 = vmatprep.subr.bf16.mxu0 0
      %335 = vmatpush1.bf16.msra.mxu0 %v318
      %336 = vmatprep.subr.bf16.mxu0 0
      %337 = vmatpush2.bf16.msra.mxu0 0
      %338 = vmatprep.subr.bf16.mxu0 0
      %339 = vmatpush2.bf16.msra.mxu0 0
      %340 = vmatprep.subr.bf16.mxu0 0
      %341 = vmatpush2.bf16.msra.mxu0 0
      %342 = vmatprep.subr.bf16.mxu0 0
      %343 = vmatpush2.bf16.msra.mxu0 0
      %344 = vmatprep.subr.bf16.mxu0 0
      %345 = vmatpush2.bf16.msra.mxu0 0
      %346 = vmatprep.subr.bf16.mxu0 0
      %347 = vmatpush2.bf16.msra.mxu0 0
      %348 = vmatprep.subr.bf16.mxu0 0
      %349 = vmatpush2.bf16.msra.mxu0 0
      %350 = vmatprep.subr.bf16.mxu0 0
      %351 = vmatpush2.bf16.msra.mxu0 0
      %352 = vmatprep.mubr.bf16.mxu0 0
      %353 = vmatmul.mubr.bf16.gmra.mxu0 %v314
      %v354 = vpop.f32.mrf.mxu0
      %v355 = vadd.f32 0.0, %v354
      %v356 = vpop.f32.mrf.mxu0
      %v357 = vpop.f32.mrf.mxu0
      %v358 = vpop.f32.mrf.mxu0
      %359 = vdwg.mxu0
      %v361 = vunpack.c.l.b16 %v247
      %v362 = vpack.c.b16 %v361, %v361
      %363 = vrot.lane.b32.xlu0 %v362, 120
      %v364 = vpop.permute.xlu0 %363
      %365 = vrot.lane.b32.xlu0 %v310, 120
      %v366 = vpop.permute.xlu0 %365
      %v368 = vsel %vm249, %v364, 0
      %v371 = vsel %vm249, %v366, 0
      %373 = vmatprep.subr.bf16.mxu0 0
      %374 = vmatpush1.bf16.xpose.msra.mxu0 0
      %375 = vmatprep.subr.bf16.mxu0 0
      %376 = vmatpush1.bf16.xpose.msra.mxu0 0
      %377 = vmatprep.subr.bf16.mxu0 0
      %378 = vmatpush1.bf16.xpose.msra.mxu0 0
      %379 = vmatprep.subr.bf16.mxu0 0
      %380 = vmatpush1.bf16.xpose.msra.mxu0 0
      %381 = vmatprep.subr.bf16.mxu0 0
      %382 = vmatpush1.bf16.xpose.msra.mxu0 0
      %383 = vmatprep.subr.bf16.mxu0 0
      %384 = vmatpush1.bf16.xpose.msra.mxu0 0
      %385 = vmatprep.subr.bf16.mxu0 0
      %386 = vmatpush1.bf16.xpose.msra.mxu0 0
      %387 = vmatprep.subr.bf16.mxu0 0
      %388 = vmatpush1.bf16.xpose.msra.mxu0 %v371
      %389 = vmatprep.subr.bf16.mxu0 0
      %390 = vmatpush2.bf16.xpose.msra.mxu0 0
      %391 = vmatprep.subr.bf16.mxu0 0
      %392 = vmatpush2.bf16.xpose.msra.mxu0 0
      %393 = vmatprep.subr.bf16.mxu0 0
      %394 = vmatpush2.bf16.xpose.msra.mxu0 0
      %395 = vmatprep.subr.bf16.mxu0 0
      %396 = vmatpush2.bf16.xpose.msra.mxu0 0
      %397 = vmatprep.subr.bf16.mxu0 0
      %398 = vmatpush2.bf16.xpose.msra.mxu0 0
      %399 = vmatprep.subr.bf16.mxu0 0
      %400 = vmatpush2.bf16.xpose.msra.mxu0 0
      %401 = vmatprep.subr.bf16.mxu0 0
      %402 = vmatpush2.bf16.xpose.msra.mxu0 0
      %403 = vmatprep.subr.bf16.mxu0 0
      %404 = vmatpush2.bf16.xpose.msra.mxu0 0
      %405 = vmatprep.mubr.bf16.mxu0 0
      %406 = vmatmul.mubr.bf16.gmra.mxu0 %v368
      %v407 = vpop.f32.mrf.mxu0
      %v408 = vadd.f32 %v245, %v407
      %v409 = vpop.f32.mrf.mxu0
      %v410 = vpop.f32.mrf.mxu0
      %v411 = vpop.f32.mrf.mxu0
      %412 = vdwg.mxu0
      %v413 = vsel %vm249, %v408, -inf
      %414 = vmax.xlane.f32.xlu0 %v413
      %v415 = vpop.xlane.xlu0 %414
      %v416 = vsub.f32 %v408, %v415
      %v417 = vmul.f32 %v416, 1.442695
      %v418 = vpow.pop %v417
      %v419 = vsel %vm249, %v418, 0.0
      %420 = vadd.xlane.f32.xlu0 %v419
      %v421 = vpop.xlane.xlu0 %420
      %v422 = vrcp.pop %v421
      %v423 = vmul.f32 %v418, %v422
      %v424 = vpack.c.bf16 %v423, %v423
      %425 = vrot.lane.b32.xlu0 %v310, 88
      %v426 = vpop.permute.xlu0 %425
      %v428 = vsel %vm249, %v424, 0
      %v431 = vsel %vm316, %v426, 0
      %433 = vmatprep.subr.bf16.mxu0 0
      %434 = vmatpush1.bf16.msra.mxu0 0
      %435 = vmatprep.subr.bf16.mxu0 0
      %436 = vmatpush1.bf16.msra.mxu0 0
      %437 = vmatprep.subr.bf16.mxu0 0
      %438 = vmatpush1.bf16.msra.mxu0 0
      %439 = vmatprep.subr.bf16.mxu0 0
      %440 = vmatpush1.bf16.msra.mxu0 0
      %441 = vmatprep.subr.bf16.mxu0 0
      %442 = vmatpush1.bf16.msra.mxu0 0
      %443 = vmatprep.subr.bf16.mxu0 0
      %444 = vmatpush1.bf16.msra.mxu0 0
      %445 = vmatprep.subr.bf16.mxu0 0
      %446 = vmatpush1.bf16.msra.mxu0 0
      %447 = vmatprep.subr.bf16.mxu0 0
      %448 = vmatpush1.bf16.msra.mxu0 %v431
      %449 = vmatprep.subr.bf16.mxu0 0
      %450 = vmatpush2.bf16.msra.mxu0 0
      %451 = vmatprep.subr.bf16.mxu0 0
      %452 = vmatpush2.bf16.msra.mxu0 0
      %453 = vmatprep.subr.bf16.mxu0 0
      %454 = vmatpush2.bf16.msra.mxu0 0
      %455 = vmatprep.subr.bf16.mxu0 0
      %456 = vmatpush2.bf16.msra.mxu0 0
      %457 = vmatprep.subr.bf16.mxu0 0
      %458 = vmatpush2.bf16.msra.mxu0 0
      %459 = vmatprep.subr.bf16.mxu0 0
      %460 = vmatpush2.bf16.msra.mxu0 0
      %461 = vmatprep.subr.bf16.mxu0 0
      %462 = vmatpush2.bf16.msra.mxu0 0
      %463 = vmatprep.subr.bf16.mxu0 0
      %464 = vmatpush2.bf16.msra.mxu0 0
      %465 = vmatprep.mubr.bf16.mxu0 0
      %466 = vmatmul.mubr.bf16.gmra.mxu0 %v428
      %v467 = vpop.f32.mrf.mxu0
      %v468 = vadd.f32 0.0, %v467
      %v469 = vpop.f32.mrf.mxu0
      %v470 = vpop.f32.mrf.mxu0
      %v471 = vpop.f32.mrf.mxu0
      %472 = vdwg.mxu0
      %473 = vrot.lane.b32.xlu0 %v362, 112
      %v474 = vpop.permute.xlu0 %473
      %475 = vrot.lane.b32.xlu0 %v310, 112
      %v476 = vpop.permute.xlu0 %475
      %v478 = vsel %vm249, %v474, 0
      %v481 = vsel %vm249, %v476, 0
      %483 = vmatprep.subr.bf16.mxu0 0
      %484 = vmatpush1.bf16.xpose.msra.mxu0 0
      %485 = vmatprep.subr.bf16.mxu0 0
      %486 = vmatpush1.bf16.xpose.msra.mxu0 0
      %487 = vmatprep.subr.bf16.mxu0 0
      %488 = vmatpush1.bf16.xpose.msra.mxu0 0
      %489 = vmatprep.subr.bf16.mxu0 0
      %490 = vmatpush1.bf16.xpose.msra.mxu0 0
      %491 = vmatprep.subr.bf16.mxu0 0
      %492 = vmatpush1.bf16.xpose.msra.mxu0 0
      %493 = vmatprep.subr.bf16.mxu0 0
      %494 = vmatpush1.bf16.xpose.msra.mxu0 0
      %495 = vmatprep.subr.bf16.mxu0 0
      %496 = vmatpush1.bf16.xpose.msra.mxu0 0
      %497 = vmatprep.subr.bf16.mxu0 0
      %498 = vmatpush1.bf16.xpose.msra.mxu0 %v481
      %499 = vmatprep.subr.bf16.mxu0 0
      %500 = vmatpush2.bf16.xpose.msra.mxu0 0
      %501 = vmatprep.subr.bf16.mxu0 0
      %502 = vmatpush2.bf16.xpose.msra.mxu0 0
      %503 = vmatprep.subr.bf16.mxu0 0
      %504 = vmatpush2.bf16.xpose.msra.mxu0 0
      %505 = vmatprep.subr.bf16.mxu0 0
      %506 = vmatpush2.bf16.xpose.msra.mxu0 0
      %507 = vmatprep.subr.bf16.mxu0 0
      %508 = vmatpush2.bf16.xpose.msra.mxu0 0
      %509 = vmatprep.subr.bf16.mxu0 0
      %510 = vmatpush2.bf16.xpose.msra.mxu0 0
      %511 = vmatprep.subr.bf16.mxu0 0
      %512 = vmatpush2.bf16.xpose.msra.mxu0 0
      %513 = vmatprep.subr.bf16.mxu0 0
      %514 = vmatpush2.bf16.xpose.msra.mxu0 0
      %515 = vmatprep.mubr.bf16.mxu0 0
      %516 = vmatmul.mubr.bf16.gmra.mxu0 %v478
      %v517 = vpop.f32.mrf.mxu0
      %v518 = vadd.f32 %v245, %v517
      %v519 = vpop.f32.mrf.mxu0
      %v520 = vpop.f32.mrf.mxu0
      %v521 = vpop.f32.mrf.mxu0
      %522 = vdwg.mxu0
      %v523 = vsel %vm249, %v518, -inf
      %524 = vmax.xlane.f32.xlu0 %v523
      %v525 = vpop.xlane.xlu0 %524
      %v526 = vsub.f32 %v518, %v525
      %v527 = vmul.f32 %v526, 1.442695
      %v528 = vpow.pop %v527
      %v529 = vsel %vm249, %v528, 0.0
      %530 = vadd.xlane.f32.xlu0 %v529
      %v531 = vpop.xlane.xlu0 %530
      %v532 = vrcp.pop %v531
      %v533 = vmul.f32 %v528, %v532
      %v534 = vpack.c.bf16 %v533, %v533
      %535 = vrot.lane.b32.xlu0 %v310, 80
      %v536 = vpop.permute.xlu0 %535
      %v538 = vsel %vm249, %v534, 0
      %v541 = vsel %vm316, %v536, 0
      %543 = vmatprep.subr.bf16.mxu0 0
      %544 = vmatpush1.bf16.msra.mxu0 0
      %545 = vmatprep.subr.bf16.mxu0 0
      %546 = vmatpush1.bf16.msra.mxu0 0
      %547 = vmatprep.subr.bf16.mxu0 0
      %548 = vmatpush1.bf16.msra.mxu0 0
      %549 = vmatprep.subr.bf16.mxu0 0
      %550 = vmatpush1.bf16.msra.mxu0 0
      %551 = vmatprep.subr.bf16.mxu0 0
      %552 = vmatpush1.bf16.msra.mxu0 0
      %553 = vmatprep.subr.bf16.mxu0 0
      %554 = vmatpush1.bf16.msra.mxu0 0
      %555 = vmatprep.subr.bf16.mxu0 0
      %556 = vmatpush1.bf16.msra.mxu0 0
      %557 = vmatprep.subr.bf16.mxu0 0
      %558 = vmatpush1.bf16.msra.mxu0 %v541
      %559 = vmatprep.subr.bf16.mxu0 0
      %560 = vmatpush2.bf16.msra.mxu0 0
      %561 = vmatprep.subr.bf16.mxu0 0
      %562 = vmatpush2.bf16.msra.mxu0 0
      %563 = vmatprep.subr.bf16.mxu0 0
      %564 = vmatpush2.bf16.msra.mxu0 0
      %565 = vmatprep.subr.bf16.mxu0 0
      %566 = vmatpush2.bf16.msra.mxu0 0
      %567 = vmatprep.subr.bf16.mxu0 0
      %568 = vmatpush2.bf16.msra.mxu0 0
      %569 = vmatprep.subr.bf16.mxu0 0
      %570 = vmatpush2.bf16.msra.mxu0 0
      %571 = vmatprep.subr.bf16.mxu0 0
      %572 = vmatpush2.bf16.msra.mxu0 0
      %573 = vmatprep.subr.bf16.mxu0 0
      %574 = vmatpush2.bf16.msra.mxu0 0
      %575 = vmatprep.mubr.bf16.mxu0 0
      %576 = vmatmul.mubr.bf16.gmra.mxu0 %v538
      %v577 = vpop.f32.mrf.mxu0
      %v578 = vadd.f32 0.0, %v577
      %v579 = vpop.f32.mrf.mxu0
      %v580 = vpop.f32.mrf.mxu0
      %v581 = vpop.f32.mrf.mxu0
      %582 = vdwg.mxu0
      %583 = vrot.lane.b32.xlu0 %v362, 104
      %v584 = vpop.permute.xlu0 %583
      %585 = vrot.lane.b32.xlu0 %v310, 104
      %v586 = vpop.permute.xlu0 %585
      %v588 = vsel %vm249, %v584, 0
      %v591 = vsel %vm249, %v586, 0
      %593 = vmatprep.subr.bf16.mxu0 0
      %594 = vmatpush1.bf16.xpose.msra.mxu0 0
      %595 = vmatprep.subr.bf16.mxu0 0
      %596 = vmatpush1.bf16.xpose.msra.mxu0 0
      %597 = vmatprep.subr.bf16.mxu0 0
      %598 = vmatpush1.bf16.xpose.msra.mxu0 0
      %599 = vmatprep.subr.bf16.mxu0 0
      %600 = vmatpush1.bf16.xpose.msra.mxu0 0
      %601 = vmatprep.subr.bf16.mxu0 0
      %602 = vmatpush1.bf16.xpose.msra.mxu0 0
      %603 = vmatprep.subr.bf16.mxu0 0
      %604 = vmatpush1.bf16.xpose.msra.mxu0 0
      %605 = vmatprep.subr.bf16.mxu0 0
      %606 = vmatpush1.bf16.xpose.msra.mxu0 0
      %607 = vmatprep.subr.bf16.mxu0 0
      %608 = vmatpush1.bf16.xpose.msra.mxu0 %v591
      %609 = vmatprep.subr.bf16.mxu0 0
      %610 = vmatpush2.bf16.xpose.msra.mxu0 0
      %611 = vmatprep.subr.bf16.mxu0 0
      %612 = vmatpush2.bf16.xpose.msra.mxu0 0
      %613 = vmatprep.subr.bf16.mxu0 0
      %614 = vmatpush2.bf16.xpose.msra.mxu0 0
      %615 = vmatprep.subr.bf16.mxu0 0
      %616 = vmatpush2.bf16.xpose.msra.mxu0 0
      %617 = vmatprep.subr.bf16.mxu0 0
      %618 = vmatpush2.bf16.xpose.msra.mxu0 0
      %619 = vmatprep.subr.bf16.mxu0 0
      %620 = vmatpush2.bf16.xpose.msra.mxu0 0
      %621 = vmatprep.subr.bf16.mxu0 0
      %622 = vmatpush2.bf16.xpose.msra.mxu0 0
      %623 = vmatprep.subr.bf16.mxu0 0
      %624 = vmatpush2.bf16.xpose.msra.mxu0 0
      %625 = vmatprep.mubr.bf16.mxu0 0
      %626 = vmatmul.mubr.bf16.gmra.mxu0 %v588
      %v627 = vpop.f32.mrf.mxu0
      %v628 = vadd.f32 %v245, %v627
      %v629 = vpop.f32.mrf.mxu0
      %v630 = vpop.f32.mrf.mxu0
      %v631 = vpop.f32.mrf.mxu0
      %632 = vdwg.mxu0
      %v633 = vsel %vm249, %v628, -inf
      %634 = vmax.xlane.f32.xlu0 %v633
      %v635 = vpop.xlane.xlu0 %634
      %v636 = vsub.f32 %v628, %v635
      %v637 = vmul.f32 %v636, 1.442695
      %v638 = vpow.pop %v637
      %v639 = vsel %vm249, %v638, 0.0
      %640 = vadd.xlane.f32.xlu0 %v639
      %v641 = vpop.xlane.xlu0 %640
      %v642 = vrcp.pop %v641
      %v643 = vmul.f32 %v638, %v642
      %v644 = vpack.c.bf16 %v643, %v643
      %645 = vrot.lane.b32.xlu0 %v310, 72
      %v646 = vpop.permute.xlu0 %645
      %v648 = vsel %vm249, %v644, 0
      %v651 = vsel %vm316, %v646, 0
      %653 = vmatprep.subr.bf16.mxu0 0
      %654 = vmatpush1.bf16.msra.mxu0 0
      %655 = vmatprep.subr.bf16.mxu0 0
      %656 = vmatpush1.bf16.msra.mxu0 0
      %657 = vmatprep.subr.bf16.mxu0 0
      %658 = vmatpush1.bf16.msra.mxu0 0
      %659 = vmatprep.subr.bf16.mxu0 0
      %660 = vmatpush1.bf16.msra.mxu0 0
      %661 = vmatprep.subr.bf16.mxu0 0
      %662 = vmatpush1.bf16.msra.mxu0 0
      %663 = vmatprep.subr.bf16.mxu0 0
      %664 = vmatpush1.bf16.msra.mxu0 0
      %665 = vmatprep.subr.bf16.mxu0 0
      %666 = vmatpush1.bf16.msra.mxu0 0
      %667 = vmatprep.subr.bf16.mxu0 0
      %668 = vmatpush1.bf16.msra.mxu0 %v651
      %669 = vmatprep.subr.bf16.mxu0 0
      %670 = vmatpush2.bf16.msra.mxu0 0
      %671 = vmatprep.subr.bf16.mxu0 0
      %672 = vmatpush2.bf16.msra.mxu0 0
      %673 = vmatprep.subr.bf16.mxu0 0
      %674 = vmatpush2.bf16.msra.mxu0 0
      %675 = vmatprep.subr.bf16.mxu0 0
      %676 = vmatpush2.bf16.msra.mxu0 0
      %677 = vmatprep.subr.bf16.mxu0 0
      %678 = vmatpush2.bf16.msra.mxu0 0
      %679 = vmatprep.subr.bf16.mxu0 0
      %680 = vmatpush2.bf16.msra.mxu0 0
      %681 = vmatprep.subr.bf16.mxu0 0
      %682 = vmatpush2.bf16.msra.mxu0 0
      %683 = vmatprep.subr.bf16.mxu0 0
      %684 = vmatpush2.bf16.msra.mxu0 0
      %685 = vmatprep.mubr.bf16.mxu0 0
      %686 = vmatmul.mubr.bf16.gmra.mxu0 %v648
      %v687 = vpop.f32.mrf.mxu0
      %v688 = vadd.f32 0.0, %v687
      %v689 = vpop.f32.mrf.mxu0
      %v690 = vpop.f32.mrf.mxu0
      %v691 = vpop.f32.mrf.mxu0
      %692 = vdwg.mxu0
      %694 = vrot.lane.b32.xlu0 %v468, 8
      %v695 = vpop.permute.xlu0 %694
      %698 = vrot.lane.b32.xlu0 %v578, 16
      %v699 = vpop.permute.xlu0 %698
      %702 = vrot.lane.b32.xlu0 %v688, 24
      %v703 = vpop.permute.xlu0 %702
      %v705 = vsel %vm249, %v355, %v695
      %vm706 = vcmask 130048
      %v707 = vsel %vm706, %v705, %v699
      %vm708 = vcmask 195584
      %v709 = vsel %vm708, %v707, %v703
      %v710 = vpack.c.bf16 %v709, %v709
      %vm711 = vcmask 257024
      %712 = vst.msk [vmem:[%s241] sm:$0xf] %vm711, %v710
      %p713 = scmp.lt.s32.totalorder %s18, 1
      %s714 = scalar_select %p713, %s18, 1
      %p715 = scmp.lt.s32.totalorder %s19, 0
      %s716 = scalar_select %p715, %s19, 0
      %s717 = sadd.s32 %s716, %s714
      %s718 = smul.addr %s717, 4
      %s719 = scalar_lea.vmem %s3, %s718
      // Predicated region
      $region33: #{transformer_decoder.23} parent=31 // pred_check
        %p720 = pneg %p128
      $region34: #{transformer_decoder.23} parent=31 // pred_check_branch
        %722 = sbr.rel (%p720) target = $region36
      $region35: #{transformer_decoder.23} parent=31 // pred_region
        _
      $region36: #{transformer_decoder.23} parent=31 // pred_fallthru
        _
    $region32: #{transformer_decoder.23} parent=5 // pred_fallthru
      _
    %p723 = scmp.le.s32.totalorder 2, %s9
    // Predicated region
    $region37: #{transformer_decoder.23} parent=5 // pred_check
      %p724 = pneg %p723
    $region38: #{transformer_decoder.23} parent=5 // pred_check_branch
      %726 = sbr.rel (%p724) target = $region40
    $region39: #{transformer_decoder.23} parent=5 // pred_region
      %s727 = ssub.s32 %s9, 2
      // Predicated region
      $region41: #{transformer_decoder.23} parent=39 // pred_check
        %p728 = pneg %p134
      $region42: #{transformer_decoder.23} parent=39 // pred_check_branch
        %730 = sbr.rel (%p728) target = $region44
      $region43: #{transformer_decoder.23} parent=39 // pred_region
        %p731 = scmp.lt.s32.totalorder %s20, 1
        %s732 = scalar_select %p731, %s20, 1
        %p733 = scmp.lt.s32.totalorder %s21, 0
        %s734 = scalar_select %p733, %s21, 0
        %s735 = sadd.s32 %s734, %s732
        %s736 = smul.addr %s735, 4
        %s737 = scalar_lea.vmem %s3, %s736
      $region44: #{transformer_decoder.23} parent=39 // pred_fallthru
        _
    $region40: #{transformer_decoder.23} parent=5 // pred_fallthru
      _
  $region6: #{transformer_decoder.23} parent=0 // loop_footer
    %s13 = sadd.s32 1, %s9
  $region7: #{transformer_decoder.23} parent=0 // loop_footer_branch
    %8 = sbr.rel target = $region3
  $region8: #{transformer_decoder.23} parent=0 // loop_exit
    _

// kernel: transformer_decoder.29
$region0: #{transformer_decoder.29}
  #allocation0 [shape = 'u32[]', space=smem, size = 0x4, offset = 0x4, fixed_abs, tag = 'smem constant byte address 0x4 - core index']
  #allocation1 [shape = 'u32[144,128]{1,0:T(1,128)}', space=vmem, size = 0x12000, scoped, tag = 'internal scratch']
  #allocation2 [shape = 'f32[16,64]{1,0:T(8,128)}', space=vmem, size = 0x2000, scoped, tag = 'scratch operand']
  %s0 = inlined_call_operand.vmem [shape: bf16[16,32], index: 0, kind: input, shape index: {}]
  %s1 = inlined_call_operand.vmem [shape: bf16[32,64], index: 1, kind: input, shape index: {}]
  %s2 = inlined_call_operand.vmem [shape: f32[1,64], index: 2, kind: input, shape index: {}]
  %s3 = inlined_call_operand.vmem [shape: bf16[16,64], index: 3, kind: output, shape index: {}]
  %s4 = sld [smem:[#allocation0]]
  $region30: #{transformer_decoder.29} parent=0
    _
  %s6 = ssub.s32 1, %s4
  %s7 = scalar_select 0, %s6, %s4
  // Predicated region
  $region2: #{transformer_decoder.29} parent=0 // pred_check
    _
  $region3: #{transformer_decoder.29} parent=0 // pred_check_branch
    %9 = sbr.rel (0) target = $region5
  $region4: #{transformer_decoder.29} parent=0 // pred_region
    _
  $region5: #{transformer_decoder.29} parent=0 // pred_fallthru
    _
  // Predicated region
  $region6: #{transformer_decoder.29} parent=0 // pred_check
    _
  $region7: #{transformer_decoder.29} parent=0 // pred_check_branch
    %11 = sbr.rel (0) target = $region9
  $region8: #{transformer_decoder.29} parent=0 // pred_region
    _
  $region9: #{transformer_decoder.29} parent=0 // pred_fallthru
    _
  // Predicated region
  $region10: #{transformer_decoder.29} parent=0 // pred_check
    _
  $region11: #{transformer_decoder.29} parent=0 // pred_check_branch
    %13 = sbr.rel (0) target = $region13
  $region12: #{transformer_decoder.29} parent=0 // pred_region
    _
  $region13: #{transformer_decoder.29} parent=0 // pred_fallthru
    _
  %p15 = scmp.eq.s32.totalorder 0, 0
  // Predicated region
  $region14: #{transformer_decoder.29} parent=0 // pred_check
    %p16 = pneg %p15
  $region15: #{transformer_decoder.29} parent=0 // pred_check_branch
    %18 = sbr.rel (%p16) target = $region17
  $region16: #{transformer_decoder.29} parent=0 // pred_region
    %vm19 = vcmask 523264
    %20 = vst.msk [vmem:[#allocation2] sm:$0xff] %vm19, 0.0
    %21 = vst.msk [vmem:[#allocation2 + $0x8] sm:$0xff] %vm19, 0.0
  $region17: #{transformer_decoder.29} parent=0 // pred_fallthru
    _
  %v22 = vld [vmem:[#allocation2] sm:$0xff]
  %v23 = vld [vmem:[#allocation2 + $0x8] sm:$0xff]
  %v24 = vld [vmem:[%s0] sm:$0xf]
  %v25 = vld [vmem:[%s0 + $0x4] sm:$0xf]
  %v26 = vld [vmem:[%s1] sm:$0xf]
  %v27 = vld [vmem:[%s1 + $0x4] sm:$0xf]
  %v28 = vld [vmem:[%s1 + $0x8] sm:$0xf]
  %v29 = vld [vmem:[%s1 + $0xc] sm:$0xf]
  %v32 = vunpack.c.l.b16 %v24
  %v33 = vunpack.c.l.b16 %v25
  %v34 = vpack.c.b16 %v33, %v32
  %v39 = vunpack.c.l.b16 %v26
  %v40 = vunpack.c.l.b16 %v27
  %v41 = vunpack.c.l.b16 %v28
  %v42 = vunpack.c.l.b16 %v29
  %v43 = vpack.c.b16 %v40, %v39
  %v44 = vpack.c.b16 %v42, %v41
  %vm47 = vcmask 261120
  %v49 = vsel %vm47, %v34, 0
  %51 = vmatprep.subr.bf16.mxu0 0
  %52 = vmatpush1.bf16.msra.mxu0 0
  %53 = vmatprep.subr.bf16.mxu0 0
  %54 = vmatpush1.bf16.msra.mxu0 0
  %55 = vmatprep.subr.bf16.mxu0 0
  %56 = vmatpush1.bf16.msra.mxu0 0
  %57 = vmatprep.subr.bf16.mxu0 0
  %58 = vmatpush1.bf16.msra.mxu0 0
  %59 = vmatprep.subr.bf16.mxu0 0
  %60 = vmatpush1.bf16.msra.mxu0 0
  %61 = vmatprep.subr.bf16.mxu0 0
  %62 = vmatpush1.bf16.msra.mxu0 0
  %63 = vmatprep.subr.bf16.mxu0 0
  %64 = vmatpush1.bf16.msra.mxu0 %v44
  %65 = vmatprep.subr.bf16.mxu0 0
  %66 = vmatpush1.bf16.msra.mxu0 %v43
  %67 = vmatprep.subr.bf16.mxu0 0
  %68 = vmatpush2.bf16.msra.mxu0 0
  %69 = vmatprep.subr.bf16.mxu0 0
  %70 = vmatpush2.bf16.msra.mxu0 0
  %71 = vmatprep.subr.bf16.mxu0 0
  %72 = vmatpush2.bf16.msra.mxu0 0
  %73 = vmatprep.subr.bf16.mxu0 0
  %74 = vmatpush2.bf16.msra.mxu0 0
  %75 = vmatprep.subr.bf16.mxu0 0
  %76 = vmatpush2.bf16.msra.mxu0 0
  %77 = vmatprep.subr.bf16.mxu0 0
  %78 = vmatpush2.bf16.msra.mxu0 0
  %79 = vmatprep.subr.bf16.mxu0 0
  %80 = vmatpush2.bf16.msra.mxu0 0
  %81 = vmatprep.subr.bf16.mxu0 0
  %82 = vmatpush2.bf16.msra.mxu0 0
  %83 = vmatprep.mubr.bf16.mxu0 0
  %84 = vmatmul.mubr.bf16.gmra.mxu0 %v49
  %v85 = vpop.f32.mrf.mxu0
  %v86 = vadd.f32 0.0, %v85
  %v87 = vpop.f32.mrf.mxu0
  %v88 = vpop.f32.mrf.mxu0
  %v89 = vadd.f32 0.0, %v88
  %v90 = vpop.f32.mrf.mxu0
  %91 = vdwg.mxu0
  %v92 = vadd.f32 %v22, %v86
  %v93 = vadd.f32 %v23, %v89
  %vm94 = vcmask 523264
  %95 = vst.msk [vmem:[#allocation2] sm:$0xff] %vm94, %v92
  %96 = vst.msk [vmem:[#allocation2 + $0x8] sm:$0xff] %vm94, %v93
  // Predicated region
  $region18: #{transformer_decoder.29} parent=0 // pred_check
    %p97 = pneg %p15
  $region19: #{transformer_decoder.29} parent=0 // pred_check_branch
    %99 = sbr.rel (%p97) target = $region21
  $region20: #{transformer_decoder.29} parent=0 // pred_region
    %v100 = vld [vmem:[#allocation2] sm:$0xff]
    %v101 = vld [vmem:[#allocation2 + $0x8] sm:$0xff]
    %v102 = vld [vmem:[%s2] sm:$0x1]
    %v104 = vlaneseq
    %v105 = vshrl.u32 %v104, 7
    %v106 = vsub.s32 0, %v105
    %v107 = vrot.slane %v102, %v106
    %v109 = vadd.f32 %v100, %v107
    %v110 = vadd.f32 %v101, %v107
    %v111 = vmax.f32 %v109, 0.0
    %v112 = vmax.f32 %v110, 0.0
    %v113 = vpack.c.bf16 %v112, %v111
    %v115 = vunpack.c.l.b16 %v113
    %v116 = vunpack.c.h.b16 %v113
    %v117 = vpack.c.b16 %v115, %v115
    %v118 = vpack.c.b16 %v116, %v116
    %vm121 = vcmask 519168
    %122 = vst.msk [vmem:[%s3] sm:$0xf] %vm121, %v117
    %123 = vst.msk [vmem:[%s3 + $0x4] sm:$0xf] %vm121, %v118
  $region21: #{transformer_decoder.29} parent=0 // pred_fallthru
    _
  // Predicated region
  $region22: #{transformer_decoder.29} parent=0 // pred_check
    _
  $region23: #{transformer_decoder.29} parent=0 // pred_check_branch
    %125 = sbr.rel (0) target = $region25
  $region24: #{transformer_decoder.29} parent=0 // pred_region
    _
  $region25: #{transformer_decoder.29} parent=0 // pred_fallthru
    _
  // Predicated region
  $region26: #{transformer_decoder.29} parent=0 // pred_check
    _
  $region27: #{transformer_decoder.29} parent=0 // pred_check_branch
    %127 = sbr.rel (0) target = $region29
  $region28: #{transformer_decoder.29} parent=0 // pred_region
    _
  $region29: #{transformer_decoder.29} parent=0 // pred_fallthru
    _

// kernel: transformer_decoder.41
$region0: #{transformer_decoder.41}
  #allocation0 [shape = 'u32[]', space=smem, size = 0x4, offset = 0x4, fixed_abs, tag = 'smem constant byte address 0x4 - core index']
  #allocation1 [shape = 'u32[144,128]{1,0:T(1,128)}', space=vmem, size = 0x12000, scoped, tag = 'internal scratch']
  #allocation2 [shape = 'f32[16,16]{1,0:T(8,128)}', space=vmem, size = 0x2000, scoped, tag = 'scratch operand']
  %s0 = inlined_call_operand.vmem [shape: bf16[16,32], index: 0, kind: input, shape index: {}]
  %s1 = inlined_call_operand.vmem [shape: bf16[16,32], index: 1, kind: input, shape index: {}]
  %s2 = inlined_call_operand.vmem [shape: f32[1,16], index: 2, kind: input, shape index: {}]
  %s3 = inlined_call_operand.hbm [shape: f32[16,16], index: 3, kind: output, shape index: {}]
  %s4 = sld [smem:[#allocation0]]
  $region30: #{transformer_decoder.41} parent=0
    _
  %s6 = ssub.s32 1, %s4
  %s7 = scalar_select 0, %s6, %s4
  $region1: #{transformer_decoder.41} parent=0
    #allocation3 [shape = 'u8[8192]{0}', space=vmem, size = 0x2000, scoped, tag = 'output window, operand 0, single buffered']
    #allocation4 [shape = 's32[1]{0}', space=sflag, size = 0x4, scoped, tag = 'scoped memory for transformer_decoder.41']
    %8 = vsyncpa [#allocation4], 0
    // Predicated region
    $region2: #{transformer_decoder.41} parent=1 // pred_check
      _
    $region3: #{transformer_decoder.41} parent=1 // pred_check_branch
      %10 = sbr.rel (0) target = $region5
    $region4: #{transformer_decoder.41} parent=1 // pred_region
      _
    $region5: #{transformer_decoder.41} parent=1 // pred_fallthru
      _
    // Predicated region
    $region6: #{transformer_decoder.41} parent=1 // pred_check
      _
    $region7: #{transformer_decoder.41} parent=1 // pred_check_branch
      %12 = sbr.rel (0) target = $region9
    $region8: #{transformer_decoder.41} parent=1 // pred_region
      _
    $region9: #{transformer_decoder.41} parent=1 // pred_fallthru
      _
    // Predicated region
    $region10: #{transformer_decoder.41} parent=1 // pred_check
      _
    $region11: #{transformer_decoder.41} parent=1 // pred_check_branch
      %14 = sbr.rel (0) target = $region13
    $region12: #{transformer_decoder.41} parent=1 // pred_region
      _
    $region13: #{transformer_decoder.41} parent=1 // pred_fallthru
      _
    %p16 = scmp.eq.s32.totalorder 0, 0
    // Predicated region
    $region14: #{transformer_decoder.41} parent=1 // pred_check
      %p17 = pneg %p16
    $region15: #{transformer_decoder.41} parent=1 // pred_check_branch
      %19 = sbr.rel (%p17) target = $region17
    $region16: #{transformer_decoder.41} parent=1 // pred_region
      %vm20 = vcmask 130048
      %21 = vst.msk [vmem:[#allocation2] sm:$0xff] %vm20, 0.0
      %22 = vst.msk [vmem:[#allocation2 + $0x8] sm:$0xff] %vm20, 0.0
    $region17: #{transformer_decoder.41} parent=1 // pred_fallthru
      _
    %v23 = vld [vmem:[#allocation2] sm:$0xff]
    %v24 = vld [vmem:[#allocation2 + $0x8] sm:$0xff]
    %v25 = vld [vmem:[%s0] sm:$0xf]
    %v26 = vld [vmem:[%s0 + $0x4] sm:$0xf]
    %v27 = vld [vmem:[%s1] sm:$0xf]
    %v28 = vld [vmem:[%s1 + $0x4] sm:$0xf]
    %v31 = vunpack.c.l.b16 %v25
    %v32 = vunpack.c.l.b16 %v26
    %v33 = vpack.c.b16 %v32, %v31
    %v36 = vunpack.c.l.b16 %v27
    %v37 = vunpack.c.l.b16 %v28
    %v38 = vpack.c.b16 %v37, %v36
    %vm39 = vcmask 261120
    %v41 = vsel %vm39, %v33, 0
    %v44 = vsel %vm39, %v38, 0
    %46 = vmatprep.subr.bf16.mxu0 0
    %47 = vmatpush1.bf16.xpose.msra.mxu0 0
    %48 = vmatprep.subr.bf16.mxu0 0
    %49 = vmatpush1.bf16.xpose.msra.mxu0 0
    %50 = vmatprep.subr.bf16.mxu0 0
    %51 = vmatpush1.bf16.xpose.msra.mxu0 0
    %52 = vmatprep.subr.bf16.mxu0 0
    %53 = vmatpush1.bf16.xpose.msra.mxu0 0
    %54 = vmatprep.subr.bf16.mxu0 0
    %55 = vmatpush1.bf16.xpose.msra.mxu0 0
    %56 = vmatprep.subr.bf16.mxu0 0
    %57 = vmatpush1.bf16.xpose.msra.mxu0 0
    %58 = vmatprep.subr.bf16.mxu0 0
    %59 = vmatpush1.bf16.xpose.msra.mxu0 0
    %60 = vmatprep.subr.bf16.mxu0 0
    %61 = vmatpush1.bf16.xpose.msra.mxu0 %v44
    %62 = vmatprep.subr.bf16.mxu0 0
    %63 = vmatpush2.bf16.xpose.msra.mxu0 0
    %64 = vmatprep.subr.bf16.mxu0 0
    %65 = vmatpush2.bf16.xpose.msra.mxu0 0
    %66 = vmatprep.subr.bf16.mxu0 0
    %67 = vmatpush2.bf16.xpose.msra.mxu0 0
    %68 = vmatprep.subr.bf16.mxu0 0
    %69 = vmatpush2.bf16.xpose.msra.mxu0 0
    %70 = vmatprep.subr.bf16.mxu0 0
    %71 = vmatpush2.bf16.xpose.msra.mxu0 0
    %72 = vmatprep.subr.bf16.mxu0 0
    %73 = vmatpush2.bf16.xpose.msra.mxu0 0
    %74 = vmatprep.subr.bf16.mxu0 0
    %75 = vmatpush2.bf16.xpose.msra.mxu0 0
    %76 = vmatprep.subr.bf16.mxu0 0
    %77 = vmatpush2.bf16.xpose.msra.mxu0 0
    %78 = vmatprep.mubr.bf16.mxu0 0
    %79 = vmatmul.mubr.bf16.gmra.mxu0 %v41
    %v80 = vpop.f32.mrf.mxu0
    %v81 = vadd.f32 0.0, %v80
    %v82 = vpop.f32.mrf.mxu0
    %v83 = vpop.f32.mrf.mxu0
    %v84 = vadd.f32 0.0, %v83
    %v85 = vpop.f32.mrf.mxu0
    %86 = vdwg.mxu0
    %v87 = vadd.f32 %v23, %v81
    %v88 = vadd.f32 %v24, %v84
    %vm89 = vcmask 130048
    %90 = vst.msk [vmem:[#allocation2] sm:$0xff] %vm89, %v87
    %91 = vst.msk [vmem:[#allocation2 + $0x8] sm:$0xff] %vm89, %v88
    // Predicated region
    $region18: #{transformer_decoder.41} parent=1 // pred_check
      %p92 = pneg %p16
    $region19: #{transformer_decoder.41} parent=1 // pred_check_branch
      %94 = sbr.rel (%p92) target = $region21
    $region20: #{transformer_decoder.41} parent=1 // pred_region
      %v95 = vld [vmem:[#allocation2] sm:$0xff]
      %v96 = vld [vmem:[#allocation2 + $0x8] sm:$0xff]
      %v97 = vld [vmem:[%s2] sm:$0x1]
      %v99 = vlaneseq
      %v100 = vshrl.u32 %v99, 7
      %v101 = vsub.s32 0, %v100
      %v102 = vrot.slane %v97, %v101
      %v104 = vadd.f32 %v95, %v102
      %v105 = vadd.f32 %v96, %v102
      %106 = vst.msk [vmem:[#allocation3] sm:$0xff] %vm89, %v104
      %107 = vst.msk [vmem:[#allocation3 + $0x8] sm:$0xff] %vm89, %v105
    $region21: #{transformer_decoder.41} parent=1 // pred_fallthru
      _
    // Predicated region
    $region22: #{transformer_decoder.41} parent=1 // pred_check
      _
    $region23: #{transformer_decoder.41} parent=1 // pred_check_branch
      %109 = sbr.rel (0) target = $region25
    $region24: #{transformer_decoder.41} parent=1 // pred_region
      %s111 = ssub.s32 256, 256
      %112 = vsyncadd [#allocation4], %s111
      %s113 = sshll.u32 [#allocation3], 4
      %s114 = int_to_ptr.vmem [resolvable:$true] %s113
      %119 = dma.vmem_to_hbm [thread:$0]  %s114, 256, %s3, [#allocation4], 128, 128, 8
    $region25: #{transformer_decoder.41} parent=1 // pred_fallthru
      _
    // Predicated region
    $region26: #{transformer_decoder.41} parent=1 // pred_check
      _
    $region27: #{transformer_decoder.41} parent=1 // pred_check_branch
      %121 = sbr.rel (0) target = $region29
    $region28: #{transformer_decoder.41} parent=1 // pred_region
      %122 = dma.done [#allocation4], 256
    $region29: #{transformer_decoder.41} parent=1 // pred_fallthru
      _
    %123 = vsyncpa [#allocation4], 1

// kernel: transformer_decoder.30
$region0: #{transformer_decoder.30}
  #allocation0 [shape = 'u32[]', space=smem, size = 0x4, offset = 0x4, fixed_abs, tag = 'smem constant byte address 0x4 - core index']
  #allocation1 [shape = 'u32[144,128]{1,0:T(1,128)}', space=vmem, size = 0x12000, scoped, tag = 'internal scratch']
  #allocation2 [shape = 'f32[16,32]{1,0:T(8,128)}', space=vmem, size = 0x2000, scoped, tag = 'scratch operand']
  %s0 = inlined_call_operand.vmem [shape: bf16[16,64], index: 0, kind: input, shape index: {}]
  %s1 = inlined_call_operand.vmem [shape: bf16[64,32], index: 1, kind: input, shape index: {}]
  %s2 = inlined_call_operand.vmem [shape: f32[1,32], index: 2, kind: input, shape index: {}]
  %s3 = inlined_call_operand.vmem [shape: bf16[16,32], index: 3, kind: input, shape index: {}]
  %s4 = inlined_call_operand.vmem [shape: f32[1,32], index: 4, kind: input, shape index: {}]
  %s5 = inlined_call_operand.vmem [shape: f32[1,32], index: 5, kind: input, shape index: {}]
  %s6 = inlined_call_operand.vmem [shape: bf16[16,32], index: 6, kind: output, shape index: {}]
  %s7 = sld [smem:[#allocation0]]
  $region42: #{transformer_decoder.30} parent=0
    _
  %s9 = ssub.s32 1, %s7
  %s10 = scalar_select 0, %s9, %s7
  // Predicated region
  $region2: #{transformer_decoder.30} parent=0 // pred_check
    _
  $region3: #{transformer_decoder.30} parent=0 // pred_check_branch
    %12 = sbr.rel (0) target = $region5
  $region4: #{transformer_decoder.30} parent=0 // pred_region
    _
  $region5: #{transformer_decoder.30} parent=0 // pred_fallthru
    _
  // Predicated region
  $region6: #{transformer_decoder.30} parent=0 // pred_check
    _
  $region7: #{transformer_decoder.30} parent=0 // pred_check_branch
    %14 = sbr.rel (0) target = $region9
  $region8: #{transformer_decoder.30} parent=0 // pred_region
    _
  $region9: #{transformer_decoder.30} parent=0 // pred_fallthru
    _
  // Predicated region
  $region10: #{transformer_decoder.30} parent=0 // pred_check
    _
  $region11: #{transformer_decoder.30} parent=0 // pred_check_branch
    %16 = sbr.rel (0) target = $region13
  $region12: #{transformer_decoder.30} parent=0 // pred_region
    _
  $region13: #{transformer_decoder.30} parent=0 // pred_fallthru
    _
  // Predicated region
  $region14: #{transformer_decoder.30} parent=0 // pred_check
    _
  $region15: #{transformer_decoder.30} parent=0 // pred_check_branch
    %18 = sbr.rel (0) target = $region17
  $region16: #{transformer_decoder.30} parent=0 // pred_region
    _
  $region17: #{transformer_decoder.30} parent=0 // pred_fallthru
    _
  // Predicated region
  $region18: #{transformer_decoder.30} parent=0 // pred_check
    _
  $region19: #{transformer_decoder.30} parent=0 // pred_check_branch
    %20 = sbr.rel (0) target = $region21
  $region20: #{transformer_decoder.30} parent=0 // pred_region
    _
  $region21: #{transformer_decoder.30} parent=0 // pred_fallthru
    _
  // Predicated region
  $region22: #{transformer_decoder.30} parent=0 // pred_check
    _
  $region23: #{transformer_decoder.30} parent=0 // pred_check_branch
    %22 = sbr.rel (0) target = $region25
  $region24: #{transformer_decoder.30} parent=0 // pred_region
    _
  $region25: #{transformer_decoder.30} parent=0 // pred_fallthru
    _
  %p24 = scmp.eq.s32.totalorder 0, 0
  // Predicated region
  $region26: #{transformer_decoder.30} parent=0 // pred_check
    %p25 = pneg %p24
  $region27: #{transformer_decoder.30} parent=0 // pred_check_branch
    %27 = sbr.rel (%p25) target = $region29
  $region28: #{transformer_decoder.30} parent=0 // pred_region
    %vm28 = vcmask 261120
    %29 = vst.msk [vmem:[#allocation2] sm:$0xff] %vm28, 0.0
    %30 = vst.msk [vmem:[#allocation2 + $0x8] sm:$0xff] %vm28, 0.0
  $region29: #{transformer_decoder.30} parent=0 // pred_fallthru
    _
  %v31 = vld [vmem:[#allocation2] sm:$0xff]
  %v32 = vld [vmem:[#allocation2 + $0x8] sm:$0xff]
  %v33 = vld [vmem:[%s0] sm:$0xf]
  %v34 = vld [vmem:[%s0 + $0x4] sm:$0xf]
  %v35 = vld [vmem:[%s1] sm:$0xf]
  %v36 = vld [vmem:[%s1 + $0x4] sm:$0xf]
  %v37 = vld [vmem:[%s1 + $0x8] sm:$0xf]
  %v38 = vld [vmem:[%s1 + $0xc] sm:$0xf]
  %v39 = vld [vmem:[%s1 + $0x10] sm:$0xf]
  %v40 = vld [vmem:[%s1 + $0x14] sm:$0xf]
  %v41 = vld [vmem:[%s1 + $0x18] sm:$0xf]
  %v42 = vld [vmem:[%s1 + $0x1c] sm:$0xf]
  %v45 = vunpack.c.l.b16 %v33
  %v46 = vunpack.c.l.b16 %v34
  %v47 = vpack.c.b16 %v46, %v45
  %v56 = vunpack.c.l.b16 %v35
  %v57 = vunpack.c.l.b16 %v36
  %v58 = vunpack.c.l.b16 %v37
  %v59 = vunpack.c.l.b16 %v38
  %v60 = vunpack.c.l.b16 %v39
  %v61 = vunpack.c.l.b16 %v40
  %v62 = vunpack.c.l.b16 %v41
  %v63 = vunpack.c.l.b16 %v42
  %v64 = vpack.c.b16 %v57, %v56
  %v65 = vpack.c.b16 %v59, %v58
  %v66 = vpack.c.b16 %v61, %v60
  %v67 = vpack.c.b16 %v63, %v62
  %vm72 = vcmask 523264
  %v74 = vsel %vm72, %v47, 0
  %76 = vmatprep.subr.bf16.mxu0 0
  %77 = vmatpush1.bf16.msra.mxu0 0
  %78 = vmatprep.subr.bf16.mxu0 0
  %79 = vmatpush1.bf16.msra.mxu0 0
  %80 = vmatprep.subr.bf16.mxu0 0
  %81 = vmatpush1.bf16.msra.mxu0 0
  %82 = vmatprep.subr.bf16.mxu0 0
  %83 = vmatpush1.bf16.msra.mxu0 0
  %84 = vmatprep.subr.bf16.mxu0 0
  %85 = vmatpush1.bf16.msra.mxu0 %v67
  %86 = vmatprep.subr.bf16.mxu0 0
  %87 = vmatpush1.bf16.msra.mxu0 %v66
  %88 = vmatprep.subr.bf16.mxu0 0
  %89 = vmatpush1.bf16.msra.mxu0 %v65
  %90 = vmatprep.subr.bf16.mxu0 0
  %91 = vmatpush1.bf16.msra.mxu0 %v64
  %92 = vmatprep.subr.bf16.mxu0 0
  %93 = vmatpush2.bf16.msra.mxu0 0
  %94 = vmatprep.subr.bf16.mxu0 0
  %95 = vmatpush2.bf16.msra.mxu0 0
  %96 = vmatprep.subr.bf16.mxu0 0
  %97 = vmatpush2.bf16.msra.mxu0 0
  %98 = vmatprep.subr.bf16.mxu0 0
  %99 = vmatpush2.bf16.msra.mxu0 0
  %100 = vmatprep.subr.bf16.mxu0 0
  %101 = vmatpush2.bf16.msra.mxu0 0
  %102 = vmatprep.subr.bf16.mxu0 0
  %103 = vmatpush2.bf16.msra.mxu0 0
  %104 = vmatprep.subr.bf16.mxu0 0
  %105 = vmatpush2.bf16.msra.mxu0 0
  %106 = vmatprep.subr.bf16.mxu0 0
  %107 = vmatpush2.bf16.msra.mxu0 0
  %108 = vmatprep.mubr.bf16.mxu0 0
  %109 = vmatmul.mubr.bf16.gmra.mxu0 %v74
  %v110 = vpop.f32.mrf.mxu0
  %v111 = vadd.f32 0.0, %v110
  %v112 = vpop.f32.mrf.mxu0
  %v113 = vpop.f32.mrf.mxu0
  %v114 = vadd.f32 0.0, %v113
  %v115 = vpop.f32.mrf.mxu0
  %116 = vdwg.mxu0
  %v117 = vadd.f32 %v31, %v111
  %v118 = vadd.f32 %v32, %v114
  %vm119 = vcmask 261120
  %120 = vst.msk [vmem:[#allocation2] sm:$0xff] %vm119, %v117
  %121 = vst.msk [vmem:[#allocation2 + $0x8] sm:$0xff] %vm119, %v118
  // Predicated region
  $region30: #{transformer_decoder.30} parent=0 // pred_check
    %p122 = pneg %p24
  $region31: #{transformer_decoder.30} parent=0 // pred_check_branch
    %124 = sbr.rel (%p122) target = $region33
  $region32: #{transformer_decoder.30} parent=0 // pred_region
    %v125 = vld [vmem:[#allocation2] sm:$0xff]
    %v126 = vld [vmem:[#allocation2 + $0x8] sm:$0xff]
    %v127 = vld [vmem:[%s2] sm:$0x1]
    %v129 = vlaneseq
    %v130 = vshrl.u32 %v129, 7
    %v131 = vsub.s32 0, %v130
    %v132 = vrot.slane %v127, %v131
    %v134 = vadd.f32 %v125, %v132
    %v135 = vadd.f32 %v126, %v132
    %v136 = vld [vmem:[%s3] sm:$0xf]
    %v137 = vld [vmem:[%s3 + $0x4] sm:$0xf]
    %v138 = vunpack.c.l.bf16 %v136
    %v139 = vunpack.c.l.bf16 %v137
    %v140 = vadd.f32 %v134, %v138
    %v141 = vadd.f32 %v135, %v139
    %v142 = vsel %vm119, %v140, 0.0
    %143 = vadd.xlane.f32.xlu0 %v142
    %v144 = vpop.xlane.xlu0 %143
    %v145 = vsel %vm119, %v141, 0.0
    %146 = vadd.xlane.f32.xlu0 %v145
    %v147 = vpop.xlane.xlu0 %146
    %v148 = vrcp.pop 32.0
    %v149 = vmul.f32 %v144, %v148
    %v150 = vmul.f32 %v147, %v148
    %v151 = vsub.f32 %v140, %v149
    %v152 = vsub.f32 %v141, %v150
    %v153 = vmul.f32 %v151, %v151
    %v154 = vmul.f32 %v152, %v152
    %v155 = vsel %vm119, %v153, 0.0
    %156 = vadd.xlane.f32.xlu0 %v155
    %v157 = vpop.xlane.xlu0 %156
    %v158 = vsel %vm119, %v154, 0.0
    %159 = vadd.xlane.f32.xlu0 %v158
    %v160 = vpop.xlane.xlu0 %159
    %v161 = vmul.f32 %v157, 0.032258064
    %v162 = vmul.f32 %v160, 0.032258064
    %v163 = vrsqrt.pop %v161
    %v164 = vmul.f32 %v161, %v163
    %vm165 = vcmp.eq.f32.partialorder %v161, inf
    %v166 = vsel %vm165, %v161, %v164
    %vm167 = vcmp.eq.f32.partialorder %v161, 0.0
    %v168 = vand.u32 %v161, 2147483648
    %v169 = vsel %vm167, %v168, %v166
    %v170 = vrsqrt.pop %v162
    %v171 = vmul.f32 %v162, %v170
    %vm172 = vcmp.eq.f32.partialorder %v162, inf
    %v173 = vsel %vm172, %v162, %v171
    %vm174 = vcmp.eq.f32.partialorder %v162, 0.0
    %v175 = vand.u32 %v162, 2147483648
    %v176 = vsel %vm174, %v175, %v173
    %v177 = vadd.f32 %v169, 1e-06
    %v178 = vadd.f32 %v176, 1e-06
    %v179 = vrcp.pop %v177
    %v180 = vrcp.pop %v178
    %v181 = vld [vmem:[%s4] sm:$0x1]
    %v183 = vlaneseq
    %v184 = vshrl.u32 %v183, 7
    %v185 = vsub.s32 0, %v184
    %v186 = vrot.slane %v181, %v185
    %v188 = vmul.f32 %v186, %v151
    %v189 = vmul.f32 %v186, %v152
    %v190 = vmul.f32 %v188, %v179
    %v191 = vmul.f32 %v189, %v180
    %v192 = vld [vmem:[%s5] sm:$0x1]
    %v194 = vlaneseq
    %v195 = vshrl.u32 %v194, 7
    %v196 = vsub.s32 0, %v195
    %v197 = vrot.slane %v192, %v196
    %v199 = vadd.f32 %v190, %v197
    %v200 = vadd.f32 %v191, %v197
    %v201 = vpack.c.bf16 %v200, %v199
    %v203 = vunpack.c.l.b16 %v201
    %v204 = vunpack.c.h.b16 %v201
    %v205 = vpack.c.b16 %v203, %v203
    %v206 = vpack.c.b16 %v204, %v204
    %vm209 = vcmask 257024
    %210 = vst.msk [vmem:[%s6] sm:$0xf] %vm209, %v205
    %211 = vst.msk [vmem:[%s6 + $0x4] sm:$0xf] %vm209, %v206
  $region33: #{transformer_decoder.30} parent=0 // pred_fallthru
    _
  // Predicated region
  $region34: #{transformer_decoder.30} parent=0 // pred_check
    _
  $region35: #{transformer_decoder.30} parent=0 // pred_check_branch
    %213 = sbr.rel (0) target = $region37
  $region36: #{transformer_decoder.30} parent=0 // pred_region
    _
  $region37: #{transformer_decoder.30} parent=0 // pred_fallthru
    _
  // Predicated region
  $region38: #{transformer_decoder.30} parent=0 // pred_check
    _
  $region39: #{transformer_decoder.30} parent=0 // pred_check_branch
    %215 = sbr.rel (0) target = $region41
  $region40: #{transformer_decoder.30} parent=0 // pred_region
    _
  $region41: #{transformer_decoder.30} parent=0 // pred_fallthru
    _

</llo_original>
